<compile_context>
chip_gen: v7x
topology: tpu7x:2x2x1
jax: 0.10.0
libtpu: 0.0.40
codegen_flags: <defaults>
</compile_context>

<pallas_src>
import numpy as np
import jax
import jax.numpy as jnp
from jax.experimental import pallas as pl
from jax.experimental.pallas import tpu as pltpu

GATHER_BLOCK = 8  # gathered (row, col) pairs processed per grid step


def _make_rtd_kernel(n, gather_block):
    g_count = gather_block

    def kernel(rows_ref, cols_ref, wx_ref, wz_ref, wm_ref, *refs):
        # rows_ref is only consumed by the index_maps (row gather); the rest of
        # the scalar-prefetch metadata is read here from SMEM.
        # refs = [G x x_dist row refs, G x z_dist row refs, out_ref]
        x_rows = refs[:g_count]
        z_rows = refs[g_count:2 * g_count]
        out_ref = refs[2 * g_count]            # (1, 1, n) accumulator row

        d = pl.program_id(0)                   # direction: 0 = xz, 1 = zx
        kb = pl.program_id(1)                  # gather-block index

        @pl.when(kb == 0)
        def _init():
            out_ref[...] = jnp.zeros_like(out_ref)

        # hoisted: lane ids for the in-kernel one-hot column selection
        lane = jax.lax.broadcasted_iota(jnp.int32, (1, 1, n), 2)

        acc = jnp.zeros((1, 1, n), jnp.float32)
        for g in range(g_count):               # static unroll
            k = kb * g_count + g
            xr = x_rows[g][...]                # (1, 1, n) row of x_dist
            zr = z_rows[g][...]                # (1, 1, n) row of z_dist
            # signed quadrant weights (birth/death sign + DX block already
            # folded in; zero for the upper-left zero block and for padding)
            wx = wx_ref[d, k].astype(jnp.float32)
            wz = wz_ref[d, k].astype(jnp.float32)
            wm = wm_ref[d, k].astype(jnp.float32)
            col = cols_ref[d, k]
            onehot = (lane == col).astype(jnp.float32)
            val_row = wx * xr + wz * zr + wm * jnp.minimum(xr, zr)
            acc = acc + val_row * onehot
        out_ref[...] += acc

    return kernel


def _direction_metadata(ids_list, n, direction_is_xz, k_padded):
    """Scalar-prefetch metadata for one direction.

    ids_list: list over homology dims of (2*card, 2) int32 indices into the
    virtual (2N, 2N) matrix DX = [[0, D1], [D1, min(D1, D2)]] where
    D1 = x_dist (xz direction) or z_dist (zx direction).

    Gathered value = wx * x_dist[row, col] + wz * z_dist[row, col]
                     + wmin * min(x_dist, z_dist)[row, col]
    with the birth(-1)/death(+1) sign folded into the weights.
    """
    idx = jnp.concatenate([jnp.asarray(i, jnp.int32) for i in ids_list], axis=0)
    k0 = idx.shape[0]
    row, col = idx[:, 0], idx[:, 1]
    row_hi = row >= n
    col_hi = col >= n
    row_mod = jnp.where(row_hi, row - n, row)
    col_mod = jnp.where(col_hi, col - n, col)

    sign = jnp.tile(jnp.array([-1, 1], jnp.int32), k0 // 2)  # birth, death, ...
    is_min = row_hi & col_hi                                  # lower-right block
    is_zero = jnp.logical_not(row_hi) & jnp.logical_not(col_hi)  # upper-left 0s
    is_off = jnp.logical_not(is_min) & jnp.logical_not(is_zero)  # D1 blocks

    w_off = jnp.where(is_off, sign, 0)
    w_min = jnp.where(is_min, sign, 0)
    zeros = jnp.zeros_like(w_off)
    wx, wz = (w_off, zeros) if direction_is_xz else (zeros, w_off)

    pad = k_padded - k0

    def _pad(a):
        return jnp.pad(a, (0, pad))

    return _pad(row_mod), _pad(col_mod), _pad(wx), _pad(wz), _pad(w_min)


def rtd_loss(x_dist, z_dist, ids_xz, ids_zx, card, dim=1, is_sym=True,
             gather_block=GATHER_BLOCK):
    """Mirrors RTDLoss.forward: returns (loss_xz, loss_zx, loss)."""
    n = x_dist.shape[0]
    g = gather_block
    num_dirs = 2 if is_sym else 1
    k0 = dim * 2 * card
    k_padded = ((k0 + g - 1) // g) * g
    kb_count = k_padded // g

    per_dir = [_direction_metadata(ids_xz, n, True, k_padded)]
    if is_sym:
        per_dir.append(_direction_metadata(ids_zx, n, False, k_padded))

    rows = jnp.stack([m[0] for m in per_dir])   # (num_dirs, K) int32
    cols = jnp.stack([m[1] for m in per_dir])
    wx = jnp.stack([m[2] for m in per_dir])
    wz = jnp.stack([m[3] for m in per_dir])
    wm = jnp.stack([m[4] for m in per_dir])

    # 3-D view so the gathered row block (1, 1, n) has its last two dims equal
    # to the full array dims (TPU (8,128) block rule).
    x3 = x_dist.astype(jnp.float32).reshape(n, 1, n)
    z3 = z_dist.astype(jnp.float32).reshape(n, 1, n)

    def _row_spec(slot):
        def imap(d, kb, rows_s, cols_s, wx_s, wz_s, wm_s):
            return (rows_s[d, kb * g + slot], 0, 0)
        return pl.BlockSpec((1, 1, n), imap)

    def _out_map(d, kb, rows_s, cols_s, wx_s, wz_s, wm_s):
        return (d, 0, 0)

    grid_spec = pltpu.PrefetchScalarGridSpec(
        num_scalar_prefetch=5,
        grid=(num_dirs, kb_count),
        in_specs=[_row_spec(s) for s in range(g)]        # gathered x_dist rows
                 + [_row_spec(s) for s in range(g)],     # gathered z_dist rows
        out_specs=pl.BlockSpec((1, 1, n), _out_map),
    )

    out = pl.pallas_call(
        _make_rtd_kernel(n, g),
        out_shape=jax.ShapeDtypeStruct((num_dirs, 1, n), jnp.float32),
        grid_spec=grid_spec,
        compiler_params=pltpu.CompilerParams(
            dimension_semantics=("parallel", "arbitrary")),
    )(rows, cols, wx, wz, wm, *([x3] * g), *([z3] * g))

    sums = jnp.sum(out, axis=(1, 2))     # per-direction sum(death - birth)
    loss_xz = sums[0]
    loss_zx = sums[1] if is_sym else jnp.float32(0.0)
    loss = (loss_xz + loss_zx) / 2.0
    return loss_xz, loss_zx, loss


def _reference_direction_loss(d1, d2, idx):
    """Pure-JAX reference matching the PyTorch gather/sum semantics."""
    n = d1.shape[0]
    dzz = jnp.zeros((n, n), d1.dtype)
    d12 = jnp.minimum(d1, d2)
    dx = jnp.concatenate(
        [jnp.concatenate([dzz, d1], axis=1), jnp.concatenate([d1, d12], axis=1)],
        axis=0,
    )
    gathered = dx[idx[:, 0], idx[:, 1]]
    dgm = gathered.reshape(-1, 2)              # (card, 2): [:,0]=birth, [:,1]=death
    return jnp.sum(dgm[:, 1] - dgm[:, 0])


if __name__ == "__main__":
    key = jax.random.PRNGKey(0)
    N, D, CARD, DIM = 16, 8, 16, 1

    keys = jax.random.split(key, 2 + 2 * DIM)
    kx, kz, kids = keys[0], keys[1], keys[2:]

    x = jax.random.normal(kx, (N, D), jnp.float32)
    z = jax.random.normal(kz, (N, D), jnp.float32)

    def pdist(p):
        sq = jnp.sum((p[:, None, :] - p[None, :, :]) ** 2, axis=-1)
        return jnp.sqrt(jnp.maximum(sq, 0.0))

    x_dist = pdist(x)   # (N, N) symmetric, zero diagonal
    z_dist = pdist(z)

    # TODO(synk): Rips(DX, ...) (giotto/ripser persistent homology) is an
    # external combinatorial CPU solver; use deterministic stand-in indices.
    ids_xz = [
        jax.random.randint(kids[2 * d], (2 * CARD, 2), 0, 2 * N, dtype=jnp.int32)
        for d in range(DIM)
    ]
    ids_zx = [
        jax.random.randint(kids[2 * d + 1], (2 * CARD, 2), 0, 2 * N, dtype=jnp.int32)
        for d in range(DIM)
    ]

    loss_xz, loss_zx, loss = rtd_loss(x_dist, z_dist, ids_xz, ids_zx, CARD, DIM, True)
    loss = jax.block_until_ready(loss)

    # correctness check against the pure-JAX reference of the differentiable path
    ref_xz = sum(_reference_direction_loss(x_dist, z_dist, ids_xz[d]) for d in range(DIM))
    ref_zx = sum(_reference_direction_loss(z_dist, x_dist, ids_zx[d]) for d in range(DIM))
    np.testing.assert_allclose(np.array(loss_xz), np.array(ref_xz), rtol=1e-3, atol=1e-3)
    np.testing.assert_allclose(np.array(loss_zx), np.array(ref_zx), rtol=1e-3, atol=1e-3)
    np.testing.assert_allclose(
        np.array(loss), np.array((ref_xz + ref_zx) / 2.0), rtol=1e-3, atol=1e-3
    )

    print("KERNEL_OK")
</pallas_src>

<mosaic_0001>
module attributes {stable_mosaic.version = 11 : i64} {
  func.func @kernel(%arg0: i32, %arg1: i32, %arg2: memref<2x32xi32, #tpu.memory_space<smem>>, %arg3: memref<2x32xi32, #tpu.memory_space<smem>>, %arg4: memref<2x32xi32, #tpu.memory_space<smem>>, %arg5: memref<2x32xi32, #tpu.memory_space<smem>>, %arg6: memref<2x32xi32, #tpu.memory_space<smem>>, %arg7: memref<1x1x16xf32, #tpu.memory_space<vmem>>, %arg8: memref<1x1x16xf32, #tpu.memory_space<vmem>>, %arg9: memref<1x1x16xf32, #tpu.memory_space<vmem>>, %arg10: memref<1x1x16xf32, #tpu.memory_space<vmem>>, %arg11: memref<1x1x16xf32, #tpu.memory_space<vmem>>, %arg12: memref<1x1x16xf32, #tpu.memory_space<vmem>>, %arg13: memref<1x1x16xf32, #tpu.memory_space<vmem>>, %arg14: memref<1x1x16xf32, #tpu.memory_space<vmem>>, %arg15: memref<1x1x16xf32, #tpu.memory_space<vmem>>, %arg16: memref<1x1x16xf32, #tpu.memory_space<vmem>>, %arg17: memref<1x1x16xf32, #tpu.memory_space<vmem>>, %arg18: memref<1x1x16xf32, #tpu.memory_space<vmem>>, %arg19: memref<1x1x16xf32, #tpu.memory_space<vmem>>, %arg20: memref<1x1x16xf32, #tpu.memory_space<vmem>>, %arg21: memref<1x1x16xf32, #tpu.memory_space<vmem>>, %arg22: memref<1x1x16xf32, #tpu.memory_space<vmem>>, %arg23: memref<1x1x16xf32, #tpu.memory_space<vmem>>) attributes {dimension_semantics = [#tpu.dimension_semantics<parallel>, #tpu.dimension_semantics<arbitrary>], iteration_bounds = array<i64: 2, 4>, scalar_prefetch = 5 : i64, scratch_operands = 0 : i64, tpu.core_type = #tpu.core_type<tc>, window_params = [{transform_indices = @transform_0, window_bounds = array<i64: 1, 1, 16>}, {transform_indices = @transform_1, window_bounds = array<i64: 1, 1, 16>}, {transform_indices = @transform_2, window_bounds = array<i64: 1, 1, 16>}, {transform_indices = @transform_3, window_bounds = array<i64: 1, 1, 16>}, {transform_indices = @transform_4, window_bounds = array<i64: 1, 1, 16>}, {transform_indices = @transform_5, window_bounds = array<i64: 1, 1, 16>}, {transform_indices = @transform_6, window_bounds = array<i64: 1, 1, 16>}, {transform_indices = @transform_7, window_bounds = array<i64: 1, 1, 16>}, {transform_indices = @transform_8, window_bounds = array<i64: 1, 1, 16>}, {transform_indices = @transform_9, window_bounds = array<i64: 1, 1, 16>}, {transform_indices = @transform_10, window_bounds = array<i64: 1, 1, 16>}, {transform_indices = @transform_11, window_bounds = array<i64: 1, 1, 16>}, {transform_indices = @transform_12, window_bounds = array<i64: 1, 1, 16>}, {transform_indices = @transform_13, window_bounds = array<i64: 1, 1, 16>}, {transform_indices = @transform_14, window_bounds = array<i64: 1, 1, 16>}, {transform_indices = @transform_15, window_bounds = array<i64: 1, 1, 16>}, {transform_indices = @transform_16, window_bounds = array<i64: 1, 1, 16>}]} {
    %c0_i32 = arith.constant 0 : i32
    %0 = arith.cmpi eq, %arg1, %c0_i32 : i32
    %1 = arith.extui %0 : i1 to i32
    %c0_i32_0 = arith.constant 0 : i32
    %2 = arith.cmpi ne, %1, %c0_i32_0 : i32
    scf.if %2 {
      %cst_62 = arith.constant 0.000000e+00 : f32
      %280 = vector.broadcast %cst_62 : f32 to vector<1x1x16xf32>
      %c0_63 = arith.constant 0 : index
      %c0_64 = arith.constant 0 : index
      %c0_65 = arith.constant 0 : index
      %281 = vector.load %arg23[%c0_63, %c0_64, %c0_65] : memref<1x1x16xf32, #tpu.memory_space<vmem>>, vector<1x1x16xf32>
      tpu.vector_store %arg23[%c0_63, %c0_64, %c0_65], %280 {strides = array<i32>} : memref<1x1x16xf32, #tpu.memory_space<vmem>>, vector<1x1x16xf32>,
    } else {
    }
    %3 = tpu.iota {dimensions = array<i32: 2>} : vector<1x1x16xi32>
    %cst = arith.constant 0.000000e+00 : f32
    %4 = vector.broadcast %cst : f32 to vector<1x1x16xf32>
    %c8_i32 = arith.constant 8 : i32
    %5 = arith.muli %arg1, %c8_i32 : i32
    %c0_i32_1 = arith.constant 0 : i32
    %6 = arith.addi %5, %c0_i32_1 : i32
    %c0 = arith.constant 0 : index
    %c0_2 = arith.constant 0 : index
    %c0_3 = arith.constant 0 : index
    %7 = vector.load %arg7[%c0, %c0_2, %c0_3] : memref<1x1x16xf32, #tpu.memory_space<vmem>>, vector<1x1x16xf32>
    %c0_4 = arith.constant 0 : index
    %c0_5 = arith.constant 0 : index
    %c0_6 = arith.constant 0 : index
    %8 = vector.load %arg15[%c0_4, %c0_5, %c0_6] : memref<1x1x16xf32, #tpu.memory_space<vmem>>, vector<1x1x16xf32>
    %9 = arith.index_cast %arg0 : i32 to index
    %10 = arith.index_cast %6 : i32 to index
    %11 = memref.load %arg4[%9, %10] : memref<2x32xi32, #tpu.memory_space<smem>>
    %12 = arith.sitofp %11 : i32 to f32
    %13 = arith.index_cast %arg0 : i32 to index
    %14 = arith.index_cast %6 : i32 to index
    %15 = memref.load %arg5[%13, %14] : memref<2x32xi32, #tpu.memory_space<smem>>
    %16 = arith.sitofp %15 : i32 to f32
    %17 = arith.index_cast %arg0 : i32 to index
    %18 = arith.index_cast %6 : i32 to index
    %19 = memref.load %arg6[%17, %18] : memref<2x32xi32, #tpu.memory_space<smem>>
    %20 = arith.sitofp %19 : i32 to f32
    %21 = arith.index_cast %arg0 : i32 to index
    %22 = arith.index_cast %6 : i32 to index
    %23 = memref.load %arg3[%21, %22] : memref<2x32xi32, #tpu.memory_space<smem>>
    %24 = vector.broadcast %23 : i32 to vector<1x1x16xi32>
    %25 = arith.cmpi eq, %3, %24 : vector<1x1x16xi32>
    %26 = arith.extui %25 : vector<1x1x16xi1> to vector<1x1x16xi32>
    %27 = arith.sitofp %26 : vector<1x1x16xi32> to vector<1x1x16xf32>
    %28 = vector.broadcast %12 : f32 to vector<1x1x16xf32>
    %29 = arith.mulf %28, %7 : vector<1x1x16xf32>
    %30 = vector.broadcast %16 : f32 to vector<1x1x16xf32>
    %31 = arith.mulf %30, %8 : vector<1x1x16xf32>
    %32 = arith.addf %29, %31 : vector<1x1x16xf32>
    %33 = arith.minimumf %7, %8 : vector<1x1x16xf32>
    %34 = vector.broadcast %20 : f32 to vector<1x1x16xf32>
    %35 = arith.mulf %34, %33 : vector<1x1x16xf32>
    %36 = arith.addf %32, %35 : vector<1x1x16xf32>
    %37 = arith.mulf %36, %27 : vector<1x1x16xf32>
    %38 = arith.addf %4, %37 : vector<1x1x16xf32>
    %c8_i32_7 = arith.constant 8 : i32
    %39 = arith.muli %arg1, %c8_i32_7 : i32
    %c1_i32 = arith.constant 1 : i32
    %40 = arith.addi %39, %c1_i32 : i32
    %c0_8 = arith.constant 0 : index
    %c0_9 = arith.constant 0 : index
    %c0_10 = arith.constant 0 : index
    %41 = vector.load %arg8[%c0_8, %c0_9, %c0_10] : memref<1x1x16xf32, #tpu.memory_space<vmem>>, vector<1x1x16xf32>
    %c0_11 = arith.constant 0 : index
    %c0_12 = arith.constant 0 : index
    %c0_13 = arith.constant 0 : index
    %42 = vector.load %arg16[%c0_11, %c0_12, %c0_13] : memref<1x1x16xf32, #tpu.memory_space<vmem>>, vector<1x1x16xf32>
    %43 = arith.index_cast %arg0 : i32 to index
    %44 = arith.index_cast %40 : i32 to index
    %45 = memref.load %arg4[%43, %44] : memref<2x32xi32, #tpu.memory_space<smem>>
    %46 = arith.sitofp %45 : i32 to f32
    %47 = arith.index_cast %arg0 : i32 to index
    %48 = arith.index_cast %40 : i32 to index
    %49 = memref.load %arg5[%47, %48] : memref<2x32xi32, #tpu.memory_space<smem>>
    %50 = arith.sitofp %49 : i32 to f32
    %51 = arith.index_cast %arg0 : i32 to index
    %52 = arith.index_cast %40 : i32 to index
    %53 = memref.load %arg6[%51, %52] : memref<2x32xi32, #tpu.memory_space<smem>>
    %54 = arith.sitofp %53 : i32 to f32
    %55 = arith.index_cast %arg0 : i32 to index
    %56 = arith.index_cast %40 : i32 to index
    %57 = memref.load %arg3[%55, %56] : memref<2x32xi32, #tpu.memory_space<smem>>
    %58 = vector.broadcast %57 : i32 to vector<1x1x16xi32>
    %59 = arith.cmpi eq, %3, %58 : vector<1x1x16xi32>
    %60 = arith.extui %59 : vector<1x1x16xi1> to vector<1x1x16xi32>
    %61 = arith.sitofp %60 : vector<1x1x16xi32> to vector<1x1x16xf32>
    %62 = vector.broadcast %46 : f32 to vector<1x1x16xf32>
    %63 = arith.mulf %62, %41 : vector<1x1x16xf32>
    %64 = vector.broadcast %50 : f32 to vector<1x1x16xf32>
    %65 = arith.mulf %64, %42 : vector<1x1x16xf32>
    %66 = arith.addf %63, %65 : vector<1x1x16xf32>
    %67 = arith.minimumf %41, %42 : vector<1x1x16xf32>
    %68 = vector.broadcast %54 : f32 to vector<1x1x16xf32>
    %69 = arith.mulf %68, %67 : vector<1x1x16xf32>
    %70 = arith.addf %66, %69 : vector<1x1x16xf32>
    %71 = arith.mulf %70, %61 : vector<1x1x16xf32>
    %72 = arith.addf %38, %71 : vector<1x1x16xf32>
    %c8_i32_14 = arith.constant 8 : i32
    %73 = arith.muli %arg1, %c8_i32_14 : i32
    %c2_i32 = arith.constant 2 : i32
    %74 = arith.addi %73, %c2_i32 : i32
    %c0_15 = arith.constant 0 : index
    %c0_16 = arith.constant 0 : index
    %c0_17 = arith.constant 0 : index
    %75 = vector.load %arg9[%c0_15, %c0_16, %c0_17] : memref<1x1x16xf32, #tpu.memory_space<vmem>>, vector<1x1x16xf32>
    %c0_18 = arith.constant 0 : index
    %c0_19 = arith.constant 0 : index
    %c0_20 = arith.constant 0 : index
    %76 = vector.load %arg17[%c0_18, %c0_19, %c0_20] : memref<1x1x16xf32, #tpu.memory_space<vmem>>, vector<1x1x16xf32>
    %77 = arith.index_cast %arg0 : i32 to index
    %78 = arith.index_cast %74 : i32 to index
    %79 = memref.load %arg4[%77, %78] : memref<2x32xi32, #tpu.memory_space<smem>>
    %80 = arith.sitofp %79 : i32 to f32
    %81 = arith.index_cast %arg0 : i32 to index
    %82 = arith.index_cast %74 : i32 to index
    %83 = memref.load %arg5[%81, %82] : memref<2x32xi32, #tpu.memory_space<smem>>
    %84 = arith.sitofp %83 : i32 to f32
    %85 = arith.index_cast %arg0 : i32 to index
    %86 = arith.index_cast %74 : i32 to index
    %87 = memref.load %arg6[%85, %86] : memref<2x32xi32, #tpu.memory_space<smem>>
    %88 = arith.sitofp %87 : i32 to f32
    %89 = arith.index_cast %arg0 : i32 to index
    %90 = arith.index_cast %74 : i32 to index
    %91 = memref.load %arg3[%89, %90] : memref<2x32xi32, #tpu.memory_space<smem>>
    %92 = vector.broadcast %91 : i32 to vector<1x1x16xi32>
    %93 = arith.cmpi eq, %3, %92 : vector<1x1x16xi32>
    %94 = arith.extui %93 : vector<1x1x16xi1> to vector<1x1x16xi32>
    %95 = arith.sitofp %94 : vector<1x1x16xi32> to vector<1x1x16xf32>
    %96 = vector.broadcast %80 : f32 to vector<1x1x16xf32>
    %97 = arith.mulf %96, %75 : vector<1x1x16xf32>
    %98 = vector.broadcast %84 : f32 to vector<1x1x16xf32>
    %99 = arith.mulf %98, %76 : vector<1x1x16xf32>
    %100 = arith.addf %97, %99 : vector<1x1x16xf32>
    %101 = arith.minimumf %75, %76 : vector<1x1x16xf32>
    %102 = vector.broadcast %88 : f32 to vector<1x1x16xf32>
    %103 = arith.mulf %102, %101 : vector<1x1x16xf32>
    %104 = arith.addf %100, %103 : vector<1x1x16xf32>
    %105 = arith.mulf %104, %95 : vector<1x1x16xf32>
    %106 = arith.addf %72, %105 : vector<1x1x16xf32>
    %c8_i32_21 = arith.constant 8 : i32
    %107 = arith.muli %arg1, %c8_i32_21 : i32
    %c3_i32 = arith.constant 3 : i32
    %108 = arith.addi %107, %c3_i32 : i32
    %c0_22 = arith.constant 0 : index
    %c0_23 = arith.constant 0 : index
    %c0_24 = arith.constant 0 : index
    %109 = vector.load %arg10[%c0_22, %c0_23, %c0_24] : memref<1x1x16xf32, #tpu.memory_space<vmem>>, vector<1x1x16xf32>
    %c0_25 = arith.constant 0 : index
    %c0_26 = arith.constant 0 : index
    %c0_27 = arith.constant 0 : index
    %110 = vector.load %arg18[%c0_25, %c0_26, %c0_27] : memref<1x1x16xf32, #tpu.memory_space<vmem>>, vector<1x1x16xf32>
    %111 = arith.index_cast %arg0 : i32 to index
    %112 = arith.index_cast %108 : i32 to index
    %113 = memref.load %arg4[%111, %112] : memref<2x32xi32, #tpu.memory_space<smem>>
    %114 = arith.sitofp %113 : i32 to f32
    %115 = arith.index_cast %arg0 : i32 to index
    %116 = arith.index_cast %108 : i32 to index
    %117 = memref.load %arg5[%115, %116] : memref<2x32xi32, #tpu.memory_space<smem>>
    %118 = arith.sitofp %117 : i32 to f32
    %119 = arith.index_cast %arg0 : i32 to index
    %120 = arith.index_cast %108 : i32 to index
    %121 = memref.load %arg6[%119, %120] : memref<2x32xi32, #tpu.memory_space<smem>>
    %122 = arith.sitofp %121 : i32 to f32
    %123 = arith.index_cast %arg0 : i32 to index
    %124 = arith.index_cast %108 : i32 to index
    %125 = memref.load %arg3[%123, %124] : memref<2x32xi32, #tpu.memory_space<smem>>
    %126 = vector.broadcast %125 : i32 to vector<1x1x16xi32>
    %127 = arith.cmpi eq, %3, %126 : vector<1x1x16xi32>
    %128 = arith.extui %127 : vector<1x1x16xi1> to vector<1x1x16xi32>
    %129 = arith.sitofp %128 : vector<1x1x16xi32> to vector<1x1x16xf32>
    %130 = vector.broadcast %114 : f32 to vector<1x1x16xf32>
    %131 = arith.mulf %130, %109 : vector<1x1x16xf32>
    %132 = vector.broadcast %118 : f32 to vector<1x1x16xf32>
    %133 = arith.mulf %132, %110 : vector<1x1x16xf32>
    %134 = arith.addf %131, %133 : vector<1x1x16xf32>
    %135 = arith.minimumf %109, %110 : vector<1x1x16xf32>
    %136 = vector.broadcast %122 : f32 to vector<1x1x16xf32>
    %137 = arith.mulf %136, %135 : vector<1x1x16xf32>
    %138 = arith.addf %134, %137 : vector<1x1x16xf32>
    %139 = arith.mulf %138, %129 : vector<1x1x16xf32>
    %140 = arith.addf %106, %139 : vector<1x1x16xf32>
    %c8_i32_28 = arith.constant 8 : i32
    %141 = arith.muli %arg1, %c8_i32_28 : i32
    %c4_i32 = arith.constant 4 : i32
    %142 = arith.addi %141, %c4_i32 : i32
    %c0_29 = arith.constant 0 : index
    %c0_30 = arith.constant 0 : index
    %c0_31 = arith.constant 0 : index
    %143 = vector.load %arg11[%c0_29, %c0_30, %c0_31] : memref<1x1x16xf32, #tpu.memory_space<vmem>>, vector<1x1x16xf32>
    %c0_32 = arith.constant 0 : index
    %c0_33 = arith.constant 0 : index
    %c0_34 = arith.constant 0 : index
    %144 = vector.load %arg19[%c0_32, %c0_33, %c0_34] : memref<1x1x16xf32, #tpu.memory_space<vmem>>, vector<1x1x16xf32>
    %145 = arith.index_cast %arg0 : i32 to index
    %146 = arith.index_cast %142 : i32 to index
    %147 = memref.load %arg4[%145, %146] : memref<2x32xi32, #tpu.memory_space<smem>>
    %148 = arith.sitofp %147 : i32 to f32
    %149 = arith.index_cast %arg0 : i32 to index
    %150 = arith.index_cast %142 : i32 to index
    %151 = memref.load %arg5[%149, %150] : memref<2x32xi32, #tpu.memory_space<smem>>
    %152 = arith.sitofp %151 : i32 to f32
    %153 = arith.index_cast %arg0 : i32 to index
    %154 = arith.index_cast %142 : i32 to index
    %155 = memref.load %arg6[%153, %154] : memref<2x32xi32, #tpu.memory_space<smem>>
    %156 = arith.sitofp %155 : i32 to f32
    %157 = arith.index_cast %arg0 : i32 to index
    %158 = arith.index_cast %142 : i32 to index
    %159 = memref.load %arg3[%157, %158] : memref<2x32xi32, #tpu.memory_space<smem>>
    %160 = vector.broadcast %159 : i32 to vector<1x1x16xi32>
    %161 = arith.cmpi eq, %3, %160 : vector<1x1x16xi32>
    %162 = arith.extui %161 : vector<1x1x16xi1> to vector<1x1x16xi32>
    %163 = arith.sitofp %162 : vector<1x1x16xi32> to vector<1x1x16xf32>
    %164 = vector.broadcast %148 : f32 to vector<1x1x16xf32>
    %165 = arith.mulf %164, %143 : vector<1x1x16xf32>
    %166 = vector.broadcast %152 : f32 to vector<1x1x16xf32>
    %167 = arith.mulf %166, %144 : vector<1x1x16xf32>
    %168 = arith.addf %165, %167 : vector<1x1x16xf32>
    %169 = arith.minimumf %143, %144 : vector<1x1x16xf32>
    %170 = vector.broadcast %156 : f32 to vector<1x1x16xf32>
    %171 = arith.mulf %170, %169 : vector<1x1x16xf32>
    %172 = arith.addf %168, %171 : vector<1x1x16xf32>
    %173 = arith.mulf %172, %163 : vector<1x1x16xf32>
    %174 = arith.addf %140, %173 : vector<1x1x16xf32>
    %c8_i32_35 = arith.constant 8 : i32
    %175 = arith.muli %arg1, %c8_i32_35 : i32
    %c5_i32 = arith.constant 5 : i32
    %176 = arith.addi %175, %c5_i32 : i32
    %c0_36 = arith.constant 0 : index
    %c0_37 = arith.constant 0 : index
    %c0_38 = arith.constant 0 : index
    %177 = vector.load %arg12[%c0_36, %c0_37, %c0_38] : memref<1x1x16xf32, #tpu.memory_space<vmem>>, vector<1x1x16xf32>
    %c0_39 = arith.constant 0 : index
    %c0_40 = arith.constant 0 : index
    %c0_41 = arith.constant 0 : index
    %178 = vector.load %arg20[%c0_39, %c0_40, %c0_41] : memref<1x1x16xf32, #tpu.memory_space<vmem>>, vector<1x1x16xf32>
    %179 = arith.index_cast %arg0 : i32 to index
    %180 = arith.index_cast %176 : i32 to index
    %181 = memref.load %arg4[%179, %180] : memref<2x32xi32, #tpu.memory_space<smem>>
    %182 = arith.sitofp %181 : i32 to f32
    %183 = arith.index_cast %arg0 : i32 to index
    %184 = arith.index_cast %176 : i32 to index
    %185 = memref.load %arg5[%183, %184] : memref<2x32xi32, #tpu.memory_space<smem>>
    %186 = arith.sitofp %185 : i32 to f32
    %187 = arith.index_cast %arg0 : i32 to index
    %188 = arith.index_cast %176 : i32 to index
    %189 = memref.load %arg6[%187, %188] : memref<2x32xi32, #tpu.memory_space<smem>>
    %190 = arith.sitofp %189 : i32 to f32
    %191 = arith.index_cast %arg0 : i32 to index
    %192 = arith.index_cast %176 : i32 to index
    %193 = memref.load %arg3[%191, %192] : memref<2x32xi32, #tpu.memory_space<smem>>
    %194 = vector.broadcast %193 : i32 to vector<1x1x16xi32>
    %195 = arith.cmpi eq, %3, %194 : vector<1x1x16xi32>
    %196 = arith.extui %195 : vector<1x1x16xi1> to vector<1x1x16xi32>
    %197 = arith.sitofp %196 : vector<1x1x16xi32> to vector<1x1x16xf32>
    %198 = vector.broadcast %182 : f32 to vector<1x1x16xf32>
    %199 = arith.mulf %198, %177 : vector<1x1x16xf32>
    %200 = vector.broadcast %186 : f32 to vector<1x1x16xf32>
    %201 = arith.mulf %200, %178 : vector<1x1x16xf32>
    %202 = arith.addf %199, %201 : vector<1x1x16xf32>
    %203 = arith.minimumf %177, %178 : vector<1x1x16xf32>
    %204 = vector.broadcast %190 : f32 to vector<1x1x16xf32>
    %205 = arith.mulf %204, %203 : vector<1x1x16xf32>
    %206 = arith.addf %202, %205 : vector<1x1x16xf32>
    %207 = arith.mulf %206, %197 : vector<1x1x16xf32>
    %208 = arith.addf %174, %207 : vector<1x1x16xf32>
    %c8_i32_42 = arith.constant 8 : i32
    %209 = arith.muli %arg1, %c8_i32_42 : i32
    %c6_i32 = arith.constant 6 : i32
    %210 = arith.addi %209, %c6_i32 : i32
    %c0_43 = arith.constant 0 : index
    %c0_44 = arith.constant 0 : index
    %c0_45 = arith.constant 0 : index
    %211 = vector.load %arg13[%c0_43, %c0_44, %c0_45] : memref<1x1x16xf32, #tpu.memory_space<vmem>>, vector<1x1x16xf32>
    %c0_46 = arith.constant 0 : index
    %c0_47 = arith.constant 0 : index
    %c0_48 = arith.constant 0 : index
    %212 = vector.load %arg21[%c0_46, %c0_47, %c0_48] : memref<1x1x16xf32, #tpu.memory_space<vmem>>, vector<1x1x16xf32>
    %213 = arith.index_cast %arg0 : i32 to index
    %214 = arith.index_cast %210 : i32 to index
    %215 = memref.load %arg4[%213, %214] : memref<2x32xi32, #tpu.memory_space<smem>>
    %216 = arith.sitofp %215 : i32 to f32
    %217 = arith.index_cast %arg0 : i32 to index
    %218 = arith.index_cast %210 : i32 to index
    %219 = memref.load %arg5[%217, %218] : memref<2x32xi32, #tpu.memory_space<smem>>
    %220 = arith.sitofp %219 : i32 to f32
    %221 = arith.index_cast %arg0 : i32 to index
    %222 = arith.index_cast %210 : i32 to index
    %223 = memref.load %arg6[%221, %222] : memref<2x32xi32, #tpu.memory_space<smem>>
    %224 = arith.sitofp %223 : i32 to f32
    %225 = arith.index_cast %arg0 : i32 to index
    %226 = arith.index_cast %210 : i32 to index
    %227 = memref.load %arg3[%225, %226] : memref<2x32xi32, #tpu.memory_space<smem>>
    %228 = vector.broadcast %227 : i32 to vector<1x1x16xi32>
    %229 = arith.cmpi eq, %3, %228 : vector<1x1x16xi32>
    %230 = arith.extui %229 : vector<1x1x16xi1> to vector<1x1x16xi32>
    %231 = arith.sitofp %230 : vector<1x1x16xi32> to vector<1x1x16xf32>
    %232 = vector.broadcast %216 : f32 to vector<1x1x16xf32>
    %233 = arith.mulf %232, %211 : vector<1x1x16xf32>
    %234 = vector.broadcast %220 : f32 to vector<1x1x16xf32>
    %235 = arith.mulf %234, %212 : vector<1x1x16xf32>
    %236 = arith.addf %233, %235 : vector<1x1x16xf32>
    %237 = arith.minimumf %211, %212 : vector<1x1x16xf32>
    %238 = vector.broadcast %224 : f32 to vector<1x1x16xf32>
    %239 = arith.mulf %238, %237 : vector<1x1x16xf32>
    %240 = arith.addf %236, %239 : vector<1x1x16xf32>
    %241 = arith.mulf %240, %231 : vector<1x1x16xf32>
    %242 = arith.addf %208, %241 : vector<1x1x16xf32>
    %c8_i32_49 = arith.constant 8 : i32
    %243 = arith.muli %arg1, %c8_i32_49 : i32
    %c7_i32 = arith.constant 7 : i32
    %244 = arith.addi %243, %c7_i32 : i32
    %c0_50 = arith.constant 0 : index
    %c0_51 = arith.constant 0 : index
    %c0_52 = arith.constant 0 : index
    %245 = vector.load %arg14[%c0_50, %c0_51, %c0_52] : memref<1x1x16xf32, #tpu.memory_space<vmem>>, vector<1x1x16xf32>
    %c0_53 = arith.constant 0 : index
    %c0_54 = arith.constant 0 : index
    %c0_55 = arith.constant 0 : index
    %246 = vector.load %arg22[%c0_53, %c0_54, %c0_55] : memref<1x1x16xf32, #tpu.memory_space<vmem>>, vector<1x1x16xf32>
    %247 = arith.index_cast %arg0 : i32 to index
    %248 = arith.index_cast %244 : i32 to index
    %249 = memref.load %arg4[%247, %248] : memref<2x32xi32, #tpu.memory_space<smem>>
    %250 = arith.sitofp %249 : i32 to f32
    %251 = arith.index_cast %arg0 : i32 to index
    %252 = arith.index_cast %244 : i32 to index
    %253 = memref.load %arg5[%251, %252] : memref<2x32xi32, #tpu.memory_space<smem>>
    %254 = arith.sitofp %253 : i32 to f32
    %255 = arith.index_cast %arg0 : i32 to index
    %256 = arith.index_cast %244 : i32 to index
    %257 = memref.load %arg6[%255, %256] : memref<2x32xi32, #tpu.memory_space<smem>>
    %258 = arith.sitofp %257 : i32 to f32
    %259 = arith.index_cast %arg0 : i32 to index
    %260 = arith.index_cast %244 : i32 to index
    %261 = memref.load %arg3[%259, %260] : memref<2x32xi32, #tpu.memory_space<smem>>
    %262 = vector.broadcast %261 : i32 to vector<1x1x16xi32>
    %263 = arith.cmpi eq, %3, %262 : vector<1x1x16xi32>
    %264 = arith.extui %263 : vector<1x1x16xi1> to vector<1x1x16xi32>
    %265 = arith.sitofp %264 : vector<1x1x16xi32> to vector<1x1x16xf32>
    %266 = vector.broadcast %250 : f32 to vector<1x1x16xf32>
    %267 = arith.mulf %266, %245 : vector<1x1x16xf32>
    %268 = vector.broadcast %254 : f32 to vector<1x1x16xf32>
    %269 = arith.mulf %268, %246 : vector<1x1x16xf32>
    %270 = arith.addf %267, %269 : vector<1x1x16xf32>
    %271 = arith.minimumf %245, %246 : vector<1x1x16xf32>
    %272 = vector.broadcast %258 : f32 to vector<1x1x16xf32>
    %273 = arith.mulf %272, %271 : vector<1x1x16xf32>
    %274 = arith.addf %270, %273 : vector<1x1x16xf32>
    %275 = arith.mulf %274, %265 : vector<1x1x16xf32>
    %276 = arith.addf %242, %275 : vector<1x1x16xf32>
    %c0_56 = arith.constant 0 : index
    %c0_57 = arith.constant 0 : index
    %c0_58 = arith.constant 0 : index
    %277 = vector.load %arg23[%c0_56, %c0_57, %c0_58] : memref<1x1x16xf32, #tpu.memory_space<vmem>>, vector<1x1x16xf32>
    %278 = arith.addf %277, %276 : vector<1x1x16xf32>
    %c0_59 = arith.constant 0 : index
    %c0_60 = arith.constant 0 : index
    %c0_61 = arith.constant 0 : index
    %279 = vector.load %arg23[%c0_59, %c0_60, %c0_61] : memref<1x1x16xf32, #tpu.memory_space<vmem>>, vector<1x1x16xf32>
    tpu.vector_store %arg23[%c0_59, %c0_60, %c0_61], %278 {strides = array<i32>} : memref<1x1x16xf32, #tpu.memory_space<vmem>>, vector<1x1x16xf32>,
    return
  }
  func.func @transform_0(%arg0: i32, %arg1: i32, %arg2: memref<2x32xi32, #tpu.memory_space<smem>>, %arg3: memref<2x32xi32, #tpu.memory_space<smem>>, %arg4: memref<2x32xi32, #tpu.memory_space<smem>>, %arg5: memref<2x32xi32, #tpu.memory_space<smem>>, %arg6: memref<2x32xi32, #tpu.memory_space<smem>>) -> (i32, i32, i32) {
    %c8_i32 = arith.constant 8 : i32
    %0 = arith.muli %arg1, %c8_i32 : i32
    %c0_i32 = arith.constant 0 : i32
    %1 = arith.addi %0, %c0_i32 : i32
    %2 = arith.index_cast %arg0 : i32 to index
    %3 = arith.index_cast %1 : i32 to index
    %4 = memref.load %arg2[%2, %3] : memref<2x32xi32, #tpu.memory_space<smem>>
    %c0_i32_0 = arith.constant 0 : i32
    %c0_i32_1 = arith.constant 0 : i32
    %c0_i32_2 = arith.constant 0 : i32
    return %4, %c0_i32_0, %c0_i32_1 : i32, i32, i32
  }
  func.func @transform_1(%arg0: i32, %arg1: i32, %arg2: memref<2x32xi32, #tpu.memory_space<smem>>, %arg3: memref<2x32xi32, #tpu.memory_space<smem>>, %arg4: memref<2x32xi32, #tpu.memory_space<smem>>, %arg5: memref<2x32xi32, #tpu.memory_space<smem>>, %arg6: memref<2x32xi32, #tpu.memory_space<smem>>) -> (i32, i32, i32) {
    %c8_i32 = arith.constant 8 : i32
    %0 = arith.muli %arg1, %c8_i32 : i32
    %c1_i32 = arith.constant 1 : i32
    %1 = arith.addi %0, %c1_i32 : i32
    %2 = arith.index_cast %arg0 : i32 to index
    %3 = arith.index_cast %1 : i32 to index
    %4 = memref.load %arg2[%2, %3] : memref<2x32xi32, #tpu.memory_space<smem>>
    %c0_i32 = arith.constant 0 : i32
    %c0_i32_0 = arith.constant 0 : i32
    %c0_i32_1 = arith.constant 0 : i32
    return %4, %c0_i32, %c0_i32_0 : i32, i32, i32
  }
  func.func @transform_2(%arg0: i32, %arg1: i32, %arg2: memref<2x32xi32, #tpu.memory_space<smem>>, %arg3: memref<2x32xi32, #tpu.memory_space<smem>>, %arg4: memref<2x32xi32, #tpu.memory_space<smem>>, %arg5: memref<2x32xi32, #tpu.memory_space<smem>>, %arg6: memref<2x32xi32, #tpu.memory_space<smem>>) -> (i32, i32, i32) {
    %c8_i32 = arith.constant 8 : i32
    %0 = arith.muli %arg1, %c8_i32 : i32
    %c2_i32 = arith.constant 2 : i32
    %1 = arith.addi %0, %c2_i32 : i32
    %2 = arith.index_cast %arg0 : i32 to index
    %3 = arith.index_cast %1 : i32 to index
    %4 = memref.load %arg2[%2, %3] : memref<2x32xi32, #tpu.memory_space<smem>>
    %c0_i32 = arith.constant 0 : i32
    %c0_i32_0 = arith.constant 0 : i32
    %c0_i32_1 = arith.constant 0 : i32
    return %4, %c0_i32, %c0_i32_0 : i32, i32, i32
  }
  func.func @transform_3(%arg0: i32, %arg1: i32, %arg2: memref<2x32xi32, #tpu.memory_space<smem>>, %arg3: memref<2x32xi32, #tpu.memory_space<smem>>, %arg4: memref<2x32xi32, #tpu.memory_space<smem>>, %arg5: memref<2x32xi32, #tpu.memory_space<smem>>, %arg6: memref<2x32xi32, #tpu.memory_space<smem>>) -> (i32, i32, i32) {
    %c8_i32 = arith.constant 8 : i32
    %0 = arith.muli %arg1, %c8_i32 : i32
    %c3_i32 = arith.constant 3 : i32
    %1 = arith.addi %0, %c3_i32 : i32
    %2 = arith.index_cast %arg0 : i32 to index
    %3 = arith.index_cast %1 : i32 to index
    %4 = memref.load %arg2[%2, %3] : memref<2x32xi32, #tpu.memory_space<smem>>
    %c0_i32 = arith.constant 0 : i32
    %c0_i32_0 = arith.constant 0 : i32
    %c0_i32_1 = arith.constant 0 : i32
    return %4, %c0_i32, %c0_i32_0 : i32, i32, i32
  }
  func.func @transform_4(%arg0: i32, %arg1: i32, %arg2: memref<2x32xi32, #tpu.memory_space<smem>>, %arg3: memref<2x32xi32, #tpu.memory_space<smem>>, %arg4: memref<2x32xi32, #tpu.memory_space<smem>>, %arg5: memref<2x32xi32, #tpu.memory_space<smem>>, %arg6: memref<2x32xi32, #tpu.memory_space<smem>>) -> (i32, i32, i32) {
    %c8_i32 = arith.constant 8 : i32
    %0 = arith.muli %arg1, %c8_i32 : i32
    %c4_i32 = arith.constant 4 : i32
    %1 = arith.addi %0, %c4_i32 : i32
    %2 = arith.index_cast %arg0 : i32 to index
    %3 = arith.index_cast %1 : i32 to index
    %4 = memref.load %arg2[%2, %3] : memref<2x32xi32, #tpu.memory_space<smem>>
    %c0_i32 = arith.constant 0 : i32
    %c0_i32_0 = arith.constant 0 : i32
    %c0_i32_1 = arith.constant 0 : i32
    return %4, %c0_i32, %c0_i32_0 : i32, i32, i32
  }
  func.func @transform_5(%arg0: i32, %arg1: i32, %arg2: memref<2x32xi32, #tpu.memory_space<smem>>, %arg3: memref<2x32xi32, #tpu.memory_space<smem>>, %arg4: memref<2x32xi32, #tpu.memory_space<smem>>, %arg5: memref<2x32xi32, #tpu.memory_space<smem>>, %arg6: memref<2x32xi32, #tpu.memory_space<smem>>) -> (i32, i32, i32) {
    %c8_i32 = arith.constant 8 : i32
    %0 = arith.muli %arg1, %c8_i32 : i32
    %c5_i32 = arith.constant 5 : i32
    %1 = arith.addi %0, %c5_i32 : i32
    %2 = arith.index_cast %arg0 : i32 to index
    %3 = arith.index_cast %1 : i32 to index
    %4 = memref.load %arg2[%2, %3] : memref<2x32xi32, #tpu.memory_space<smem>>
    %c0_i32 = arith.constant 0 : i32
    %c0_i32_0 = arith.constant 0 : i32
    %c0_i32_1 = arith.constant 0 : i32
    return %4, %c0_i32, %c0_i32_0 : i32, i32, i32
  }
  func.func @transform_6(%arg0: i32, %arg1: i32, %arg2: memref<2x32xi32, #tpu.memory_space<smem>>, %arg3: memref<2x32xi32, #tpu.memory_space<smem>>, %arg4: memref<2x32xi32, #tpu.memory_space<smem>>, %arg5: memref<2x32xi32, #tpu.memory_space<smem>>, %arg6: memref<2x32xi32, #tpu.memory_space<smem>>) -> (i32, i32, i32) {
    %c8_i32 = arith.constant 8 : i32
    %0 = arith.muli %arg1, %c8_i32 : i32
    %c6_i32 = arith.constant 6 : i32
    %1 = arith.addi %0, %c6_i32 : i32
    %2 = arith.index_cast %arg0 : i32 to index
    %3 = arith.index_cast %1 : i32 to index
    %4 = memref.load %arg2[%2, %3] : memref<2x32xi32, #tpu.memory_space<smem>>
    %c0_i32 = arith.constant 0 : i32
    %c0_i32_0 = arith.constant 0 : i32
    %c0_i32_1 = arith.constant 0 : i32
    return %4, %c0_i32, %c0_i32_0 : i32, i32, i32
  }
  func.func @transform_7(%arg0: i32, %arg1: i32, %arg2: memref<2x32xi32, #tpu.memory_space<smem>>, %arg3: memref<2x32xi32, #tpu.memory_space<smem>>, %arg4: memref<2x32xi32, #tpu.memory_space<smem>>, %arg5: memref<2x32xi32, #tpu.memory_space<smem>>, %arg6: memref<2x32xi32, #tpu.memory_space<smem>>) -> (i32, i32, i32) {
    %c8_i32 = arith.constant 8 : i32
    %0 = arith.muli %arg1, %c8_i32 : i32
    %c7_i32 = arith.constant 7 : i32
    %1 = arith.addi %0, %c7_i32 : i32
    %2 = arith.index_cast %arg0 : i32 to index
    %3 = arith.index_cast %1 : i32 to index
    %4 = memref.load %arg2[%2, %3] : memref<2x32xi32, #tpu.memory_space<smem>>
    %c0_i32 = arith.constant 0 : i32
    %c0_i32_0 = arith.constant 0 : i32
    %c0_i32_1 = arith.constant 0 : i32
    return %4, %c0_i32, %c0_i32_0 : i32, i32, i32
  }
  func.func @transform_8(%arg0: i32, %arg1: i32, %arg2: memref<2x32xi32, #tpu.memory_space<smem>>, %arg3: memref<2x32xi32, #tpu.memory_space<smem>>, %arg4: memref<2x32xi32, #tpu.memory_space<smem>>, %arg5: memref<2x32xi32, #tpu.memory_space<smem>>, %arg6: memref<2x32xi32, #tpu.memory_space<smem>>) -> (i32, i32, i32) {
    %c8_i32 = arith.constant 8 : i32
    %0 = arith.muli %arg1, %c8_i32 : i32
    %c0_i32 = arith.constant 0 : i32
    %1 = arith.addi %0, %c0_i32 : i32
    %2 = arith.index_cast %arg0 : i32 to index
    %3 = arith.index_cast %1 : i32 to index
    %4 = memref.load %arg2[%2, %3] : memref<2x32xi32, #tpu.memory_space<smem>>
    %c0_i32_0 = arith.constant 0 : i32
    %c0_i32_1 = arith.constant 0 : i32
    %c0_i32_2 = arith.constant 0 : i32
    return %4, %c0_i32_0, %c0_i32_1 : i32, i32, i32
  }
  func.func @transform_9(%arg0: i32, %arg1: i32, %arg2: memref<2x32xi32, #tpu.memory_space<smem>>, %arg3: memref<2x32xi32, #tpu.memory_space<smem>>, %arg4: memref<2x32xi32, #tpu.memory_space<smem>>, %arg5: memref<2x32xi32, #tpu.memory_space<smem>>, %arg6: memref<2x32xi32, #tpu.memory_space<smem>>) -> (i32, i32, i32) {
    %c8_i32 = arith.constant 8 : i32
    %0 = arith.muli %arg1, %c8_i32 : i32
    %c1_i32 = arith.constant 1 : i32
    %1 = arith.addi %0, %c1_i32 : i32
    %2 = arith.index_cast %arg0 : i32 to index
    %3 = arith.index_cast %1 : i32 to index
    %4 = memref.load %arg2[%2, %3] : memref<2x32xi32, #tpu.memory_space<smem>>
    %c0_i32 = arith.constant 0 : i32
    %c0_i32_0 = arith.constant 0 : i32
    %c0_i32_1 = arith.constant 0 : i32
    return %4, %c0_i32, %c0_i32_0 : i32, i32, i32
  }
  func.func @transform_10(%arg0: i32, %arg1: i32, %arg2: memref<2x32xi32, #tpu.memory_space<smem>>, %arg3: memref<2x32xi32, #tpu.memory_space<smem>>, %arg4: memref<2x32xi32, #tpu.memory_space<smem>>, %arg5: memref<2x32xi32, #tpu.memory_space<smem>>, %arg6: memref<2x32xi32, #tpu.memory_space<smem>>) -> (i32, i32, i32) {
    %c8_i32 = arith.constant 8 : i32
    %0 = arith.muli %arg1, %c8_i32 : i32
    %c2_i32 = arith.constant 2 : i32
    %1 = arith.addi %0, %c2_i32 : i32
    %2 = arith.index_cast %arg0 : i32 to index
    %3 = arith.index_cast %1 : i32 to index
    %4 = memref.load %arg2[%2, %3] : memref<2x32xi32, #tpu.memory_space<smem>>
    %c0_i32 = arith.constant 0 : i32
    %c0_i32_0 = arith.constant 0 : i32
    %c0_i32_1 = arith.constant 0 : i32
    return %4, %c0_i32, %c0_i32_0 : i32, i32, i32
  }
  func.func @transform_11(%arg0: i32, %arg1: i32, %arg2: memref<2x32xi32, #tpu.memory_space<smem>>, %arg3: memref<2x32xi32, #tpu.memory_space<smem>>, %arg4: memref<2x32xi32, #tpu.memory_space<smem>>, %arg5: memref<2x32xi32, #tpu.memory_space<smem>>, %arg6: memref<2x32xi32, #tpu.memory_space<smem>>) -> (i32, i32, i32) {
    %c8_i32 = arith.constant 8 : i32
    %0 = arith.muli %arg1, %c8_i32 : i32
    %c3_i32 = arith.constant 3 : i32
    %1 = arith.addi %0, %c3_i32 : i32
    %2 = arith.index_cast %arg0 : i32 to index
    %3 = arith.index_cast %1 : i32 to index
    %4 = memref.load %arg2[%2, %3] : memref<2x32xi32, #tpu.memory_space<smem>>
    %c0_i32 = arith.constant 0 : i32
    %c0_i32_0 = arith.constant 0 : i32
    %c0_i32_1 = arith.constant 0 : i32
    return %4, %c0_i32, %c0_i32_0 : i32, i32, i32
  }
  func.func @transform_12(%arg0: i32, %arg1: i32, %arg2: memref<2x32xi32, #tpu.memory_space<smem>>, %arg3: memref<2x32xi32, #tpu.memory_space<smem>>, %arg4: memref<2x32xi32, #tpu.memory_space<smem>>, %arg5: memref<2x32xi32, #tpu.memory_space<smem>>, %arg6: memref<2x32xi32, #tpu.memory_space<smem>>) -> (i32, i32, i32) {
    %c8_i32 = arith.constant 8 : i32
    %0 = arith.muli %arg1, %c8_i32 : i32
    %c4_i32 = arith.constant 4 : i32
    %1 = arith.addi %0, %c4_i32 : i32
    %2 = arith.index_cast %arg0 : i32 to index
    %3 = arith.index_cast %1 : i32 to index
    %4 = memref.load %arg2[%2, %3] : memref<2x32xi32, #tpu.memory_space<smem>>
    %c0_i32 = arith.constant 0 : i32
    %c0_i32_0 = arith.constant 0 : i32
    %c0_i32_1 = arith.constant 0 : i32
    return %4, %c0_i32, %c0_i32_0 : i32, i32, i32
  }
  func.func @transform_13(%arg0: i32, %arg1: i32, %arg2: memref<2x32xi32, #tpu.memory_space<smem>>, %arg3: memref<2x32xi32, #tpu.memory_space<smem>>, %arg4: memref<2x32xi32, #tpu.memory_space<smem>>, %arg5: memref<2x32xi32, #tpu.memory_space<smem>>, %arg6: memref<2x32xi32, #tpu.memory_space<smem>>) -> (i32, i32, i32) {
    %c8_i32 = arith.constant 8 : i32
    %0 = arith.muli %arg1, %c8_i32 : i32
    %c5_i32 = arith.constant 5 : i32
    %1 = arith.addi %0, %c5_i32 : i32
    %2 = arith.index_cast %arg0 : i32 to index
    %3 = arith.index_cast %1 : i32 to index
    %4 = memref.load %arg2[%2, %3] : memref<2x32xi32, #tpu.memory_space<smem>>
    %c0_i32 = arith.constant 0 : i32
    %c0_i32_0 = arith.constant 0 : i32
    %c0_i32_1 = arith.constant 0 : i32
    return %4, %c0_i32, %c0_i32_0 : i32, i32, i32
  }
  func.func @transform_14(%arg0: i32, %arg1: i32, %arg2: memref<2x32xi32, #tpu.memory_space<smem>>, %arg3: memref<2x32xi32, #tpu.memory_space<smem>>, %arg4: memref<2x32xi32, #tpu.memory_space<smem>>, %arg5: memref<2x32xi32, #tpu.memory_space<smem>>, %arg6: memref<2x32xi32, #tpu.memory_space<smem>>) -> (i32, i32, i32) {
    %c8_i32 = arith.constant 8 : i32
    %0 = arith.muli %arg1, %c8_i32 : i32
    %c6_i32 = arith.constant 6 : i32
    %1 = arith.addi %0, %c6_i32 : i32
    %2 = arith.index_cast %arg0 : i32 to index
    %3 = arith.index_cast %1 : i32 to index
    %4 = memref.load %arg2[%2, %3] : memref<2x32xi32, #tpu.memory_space<smem>>
    %c0_i32 = arith.constant 0 : i32
    %c0_i32_0 = arith.constant 0 : i32
    %c0_i32_1 = arith.constant 0 : i32
    return %4, %c0_i32, %c0_i32_0 : i32, i32, i32
  }
  func.func @transform_15(%arg0: i32, %arg1: i32, %arg2: memref<2x32xi32, #tpu.memory_space<smem>>, %arg3: memref<2x32xi32, #tpu.memory_space<smem>>, %arg4: memref<2x32xi32, #tpu.memory_space<smem>>, %arg5: memref<2x32xi32, #tpu.memory_space<smem>>, %arg6: memref<2x32xi32, #tpu.memory_space<smem>>) -> (i32, i32, i32) {
    %c8_i32 = arith.constant 8 : i32
    %0 = arith.muli %arg1, %c8_i32 : i32
    %c7_i32 = arith.constant 7 : i32
    %1 = arith.addi %0, %c7_i32 : i32
    %2 = arith.index_cast %arg0 : i32 to index
    %3 = arith.index_cast %1 : i32 to index
    %4 = memref.load %arg2[%2, %3] : memref<2x32xi32, #tpu.memory_space<smem>>
    %c0_i32 = arith.constant 0 : i32
    %c0_i32_0 = arith.constant 0 : i32
    %c0_i32_1 = arith.constant 0 : i32
    return %4, %c0_i32, %c0_i32_0 : i32, i32, i32
  }
  func.func @transform_16(%arg0: i32, %arg1: i32, %arg2: memref<2x32xi32, #tpu.memory_space<smem>>, %arg3: memref<2x32xi32, #tpu.memory_space<smem>>, %arg4: memref<2x32xi32, #tpu.memory_space<smem>>, %arg5: memref<2x32xi32, #tpu.memory_space<smem>>, %arg6: memref<2x32xi32, #tpu.memory_space<smem>>) -> (i32, i32, i32) {
    %c0_i32 = arith.constant 0 : i32
    %c0_i32_0 = arith.constant 0 : i32
    %c0_i32_1 = arith.constant 0 : i32
    return %arg0, %c0_i32, %c0_i32_0 : i32, i32, i32
  }
}

</mosaic_0001>

<llo_original>
// kernel: tpu_custom_call.1
$region0: #{tpu_custom_call.1}
  #allocation0 [shape = 'u32[]', space=smem, size = 0x4, offset = 0x4, fixed_abs, tag = 'smem constant byte address 0x4 - core index']
  #allocation1 [shape = 'u32[144,128]{1,0:T(1,128)}', space=vmem, size = 0x12000, scoped, tag = 'internal scratch']
  #allocation2 [shape = 's32[1]{0}', space=sflag, size = 0x4, scoped, tag = 'scoped memory for tpu_custom_call.1']
  #allocation3 [shape = 'u8[1024]{0}', space=smem, size = 0x400, scoped, tag = 'prefetched SMEM operand 0']
  #allocation4 [shape = 'u8[1024]{0}', space=smem, size = 0x400, scoped, tag = 'prefetched SMEM operand 1']
  #allocation5 [shape = 'u8[1024]{0}', space=smem, size = 0x400, scoped, tag = 'prefetched SMEM operand 2']
  #allocation6 [shape = 'u8[1024]{0}', space=smem, size = 0x400, scoped, tag = 'prefetched SMEM operand 3']
  #allocation7 [shape = 'u8[1024]{0}', space=smem, size = 0x400, scoped, tag = 'prefetched SMEM operand 4']
  %s0 = inlined_call_operand.hbm [shape: s32[2,32], index: 0, kind: input, shape index: {}]
  %s1 = inlined_call_operand.hbm [shape: s32[2,32], index: 1, kind: input, shape index: {}]
  %s2 = inlined_call_operand.hbm [shape: s32[2,32], index: 2, kind: input, shape index: {}]
  %s3 = inlined_call_operand.hbm [shape: s32[2,32], index: 3, kind: input, shape index: {}]
  %s4 = inlined_call_operand.hbm [shape: s32[2,32], index: 4, kind: input, shape index: {}]
  %s5 = inlined_call_operand.vmem [shape: f32[16,1,16], index: 5, kind: input, shape index: {}]
  %s6 = inlined_call_operand.hbm [shape: f32[16,1,16], index: 6, kind: input, shape index: {}]
  %s7 = inlined_call_operand.hbm [shape: f32[16,1,16], index: 7, kind: input, shape index: {}]
  %s8 = inlined_call_operand.hbm [shape: f32[16,1,16], index: 8, kind: input, shape index: {}]
  %s9 = inlined_call_operand.vmem [shape: f32[16,1,16], index: 9, kind: input, shape index: {}]
  %s10 = inlined_call_operand.hbm [shape: f32[16,1,16], index: 10, kind: input, shape index: {}]
  %s11 = inlined_call_operand.hbm [shape: f32[16,1,16], index: 11, kind: input, shape index: {}]
  %s12 = inlined_call_operand.hbm [shape: f32[16,1,16], index: 12, kind: input, shape index: {}]
  %s13 = inlined_call_operand.vmem [shape: f32[16,1,16], index: 13, kind: input, shape index: {}]
  %s14 = inlined_call_operand.hbm [shape: f32[16,1,16], index: 14, kind: input, shape index: {}]
  %s15 = inlined_call_operand.hbm [shape: f32[16,1,16], index: 15, kind: input, shape index: {}]
  %s16 = inlined_call_operand.hbm [shape: f32[16,1,16], index: 16, kind: input, shape index: {}]
  %s17 = inlined_call_operand.vmem [shape: f32[16,1,16], index: 17, kind: input, shape index: {}]
  %s18 = inlined_call_operand.hbm [shape: f32[16,1,16], index: 18, kind: input, shape index: {}]
  %s19 = inlined_call_operand.hbm [shape: f32[16,1,16], index: 19, kind: input, shape index: {}]
  %s20 = inlined_call_operand.hbm [shape: f32[16,1,16], index: 20, kind: input, shape index: {}]
  %s21 = inlined_call_operand.hbm [shape: f32[2,1,16], index: 21, kind: output, shape index: {}]
  %s22 = sld [smem:[#allocation0]]
  $region149: #{tpu_custom_call.1} parent=0
    _
  %s24 = ssub.s32 1, %s22
  %s25 = scalar_select 0, %s24, %s22
  %27 = dma.hbm_to_smem %s0, 32, [#allocation3], [#allocation2]
  %29 = dma.hbm_to_smem %s1, 32, [#allocation4], [#allocation2]
  %31 = dma.hbm_to_smem %s2, 32, [#allocation5], [#allocation2]
  %33 = dma.hbm_to_smem %s3, 32, [#allocation6], [#allocation2]
  %35 = dma.hbm_to_smem %s4, 32, [#allocation7], [#allocation2]
  %36 = dma.done [#allocation2], 160
  %37 = sfence
  $region1: #{tpu_custom_call.1} parent=0
    #allocation8 [shape = 'u8[1024]{0}', space=vmem, size = 0x400, scoped, tag = 'input window, operand 6']
    #allocation9 [shape = 's32[2]{0}', space=sflag, size = 0x8, scoped, tag = 'scoped memory for tpu_custom_call.1']
    #allocation10 [shape = 's32[2]{0}', space=sflag, size = 0x8, scoped, tag = 'scoped memory for tpu_custom_call.1']
    #allocation11 [shape = 'u8[1024]{0}', space=vmem, size = 0x400, scoped, tag = 'input window, operand 7']
    #allocation12 [shape = 's32[2]{0}', space=sflag, size = 0x8, scoped, tag = 'scoped memory for tpu_custom_call.1']
    #allocation13 [shape = 'u8[1024]{0}', space=vmem, size = 0x400, scoped, tag = 'input window, operand 8']
    #allocation14 [shape = 'u8[1024]{0}', space=vmem, size = 0x400, scoped, tag = 'input window, operand 10']
    #allocation15 [shape = 's32[2]{0}', space=sflag, size = 0x8, scoped, tag = 'scoped memory for tpu_custom_call.1']
    #allocation16 [shape = 'u8[1024]{0}', space=vmem, size = 0x400, scoped, tag = 'input window, operand 11']
    #allocation17 [shape = 'u8[1024]{0}', space=vmem, size = 0x400, scoped, tag = 'input window, operand 12']
    #allocation18 [shape = 's32[2]{0}', space=sflag, size = 0x8, scoped, tag = 'scoped memory for tpu_custom_call.1']
    #allocation19 [shape = 'u8[1024]{0}', space=vmem, size = 0x400, scoped, tag = 'input window, operand 14']
    #allocation20 [shape = 'u8[1024]{0}', space=vmem, size = 0x400, scoped, tag = 'input window, operand 15']
    #allocation21 [shape = 's32[2]{0}', space=sflag, size = 0x8, scoped, tag = 'scoped memory for tpu_custom_call.1']
    #allocation22 [shape = 'u8[1024]{0}', space=vmem, size = 0x400, scoped, tag = 'input window, operand 16']
    #allocation23 [shape = 'u8[1024]{0}', space=vmem, size = 0x400, scoped, tag = 'input window, operand 18']
    #allocation24 [shape = 's32[2]{0}', space=sflag, size = 0x8, scoped, tag = 'scoped memory for tpu_custom_call.1']
    #allocation25 [shape = 'u8[1024]{0}', space=vmem, size = 0x400, scoped, tag = 'input window, operand 19']
    #allocation26 [shape = 'u8[1024]{0}', space=vmem, size = 0x400, scoped, tag = 'input window, operand 20']
    #allocation27 [shape = 's32[2]{0}', space=sflag, size = 0x8, scoped, tag = 'scoped memory for tpu_custom_call.1']
    #allocation28 [shape = 'u8[1024]{0}', space=vmem, size = 0x400, scoped, tag = 'output window, operand 0']
    %38 = vsyncpa [#allocation9], 0
    %s39 = scalar_lea.sflag [#allocation9], 1
    %40 = vsyncpa %s39, 0
    %41 = vsyncpa [#allocation12], 0
    %s42 = scalar_lea.sflag [#allocation12], 1
    %43 = vsyncpa %s42, 0
    %44 = vsyncpa [#allocation15], 0
    %s45 = scalar_lea.sflag [#allocation15], 1
    %46 = vsyncpa %s45, 0
    %47 = vsyncpa [#allocation18], 0
    %s48 = scalar_lea.sflag [#allocation18], 1
    %49 = vsyncpa %s48, 0
    %50 = vsyncpa [#allocation21], 0
    %s51 = scalar_lea.sflag [#allocation21], 1
    %52 = vsyncpa %s51, 0
    %53 = vsyncpa [#allocation24], 0
    %s54 = scalar_lea.sflag [#allocation24], 1
    %55 = vsyncpa %s54, 0
    %56 = vsyncpa [#allocation27], 0
    %s57 = scalar_lea.sflag [#allocation27], 1
    %58 = vsyncpa %s57, 0
    %59 = vsyncpa [#allocation10], 0
    %s60 = scalar_lea.sflag [#allocation10], 1
    %61 = vsyncpa %s60, 0
    loop: start=0, step=1, limit=10
    $region2: #{tpu_custom_call.1} parent=1 // loop_pre_header
      _
    $region3: #{tpu_custom_call.1} parent=1 // loop_header
      %s63 = sphi 0, %s67
      %p64 = scmp.ge.s32.totalorder %s63, 10
      %s70 = sphi 0, %s82
      %s71 = sphi 0, %s78
      %s72 = sphi 0, %s70
      %s73 = sphi 0, %s71
      %s74 = sphi 0, %s72
      %s75 = sphi 0, %s73
      %s103 = sphi 0, %s105
      %s106 = sphi 0, %s103
      %s107 = sphi 0, %s106
      %s123 = sphi 0, %s107
      %s149 = sphi 0, %s151
      %s152 = sphi 0, %s149
      %s153 = sphi 0, %s152
      %s169 = sphi 0, %s153
      %s195 = sphi 0, %s197
      %s198 = sphi 0, %s195
      %s199 = sphi 0, %s198
      %s215 = sphi 0, %s199
      %s241 = sphi 0, %s243
      %s244 = sphi 0, %s241
      %s245 = sphi 0, %s244
      %s261 = sphi 0, %s245
      %s287 = sphi 0, %s289
      %s290 = sphi 0, %s287
      %s291 = sphi 0, %s290
      %s307 = sphi 0, %s291
      %s333 = sphi 0, %s335
      %s336 = sphi 0, %s333
      %s337 = sphi 0, %s336
      %s353 = sphi 0, %s337
      %s379 = sphi 0, %s381
      %s382 = sphi 0, %s379
      %s383 = sphi 0, %s382
      %s399 = sphi 0, %s383
      %s425 = sphi 0, %s427
      %s428 = sphi 0, %s425
      %s429 = sphi 0, %s428
      %s445 = sphi 0, %s429
      %s469 = sphi 0, %s471
      %s472 = sphi 0, %s469
      %s473 = sphi 0, %s472
      %s489 = sphi 0, %s473
      %s515 = sphi 0, %s517
      %s518 = sphi 0, %s515
      %s519 = sphi 0, %s518
      %s535 = sphi 0, %s519
      %s561 = sphi 0, %s563
      %s564 = sphi 0, %s561
      %s565 = sphi 0, %s564
      %s581 = sphi 0, %s565
      %s607 = sphi 0, %s609
      %s610 = sphi 0, %s607
      %s611 = sphi 0, %s610
      %s627 = sphi 0, %s611
      %s653 = sphi 0, %s655
      %s656 = sphi 0, %s653
      %s657 = sphi 0, %s656
      %s673 = sphi 0, %s657
      %s699 = sphi 0, %s701
      %s702 = sphi 0, %s699
      %s703 = sphi 0, %s702
      %s719 = sphi 0, %s703
      %s745 = sphi 0, %s747
      %s748 = sphi 0, %s745
      %s749 = sphi 0, %s748
      %s765 = sphi 0, %s749
      %s791 = sphi 0, %s793
      %s794 = sphi 0, %s791
      %s795 = sphi 0, %s794
      %s811 = sphi 0, %s795
      %s817 = sphi 0, %s819
      %s820 = sphi 0, %s817
      %s821 = sphi 0, %s820
      %s837 = sphi 0, %s821
    $region4: #{tpu_custom_call.1} parent=1 // loop_header_branch
      %66 = sbr.rel (%p64) target = $region8
    $region5: #{tpu_custom_call.1} parent=1 // loop_body
      %s68 = ssub.s32 %s63, 1
      %s69 = ssub.s32 %s63, 2
      %s76 = sadd.s32 1, %s71
      %p77 = scmp.ge.s32.totalorder %s76, 4
      %s78 = scalar_select %p77, 0, %s76
      %s79 = sadd.s32 1, %s70
      %s80 = scalar_select %p77, %s79, %s70
      %p81 = scmp.ge.s32.totalorder %s80, 2
      %s82 = scalar_select %p81, 0, %s80
      %s83 = smul.u32 %s71, 8
      %s84 = sshra.s32 %s83, 7
      %s85 = sand.u32 %s83, 127
      %s86 = sadd.s32 %s84, %s70
      %s87 = smul.u32 %s86, 128
      %s88 = sshra.s32 %s83, 7
      %s89 = sand.u32 %s83, 127
      %s90 = sadd.s32 %s87, %s89
      %s91 = sld [smem:[#allocation3 + %s90]]
      %s92 = smul.u32 %s78, 8
      %s93 = sshra.s32 %s92, 7
      %s94 = sand.u32 %s92, 127
      %s95 = sadd.s32 %s93, %s82
      %s96 = smul.u32 %s95, 128
      %s97 = sshra.s32 %s92, 7
      %s98 = sand.u32 %s92, 127
      %s99 = sadd.s32 %s96, %s98
      %s100 = sld [smem:[#allocation3 + %s99]]
      %s101 = ssub.s32 %s91, %s100
      %p102 = scmp.eq.s32.totalorder %s101, 0
      %s104 = sadd.s32 %s103, 1
      %s105 = scalar_select %p102, %s103, %s104
      %p108 = pneg %p102
      %p109 = scmp.eq.s32.totalorder %s63, 7
      %p110 = por %p108, %p109
      %p111 = scmp.ne.s32.totalorder %s103, %s106
      %p112 = scmp.eq.s32.totalorder %s63, 0
      %p113 = por %p111, %p112
      %p114 = scmp.ne.s32.totalorder %s103, %s106
      %p115 = scmp.eq.s32.totalorder %s68, 7
      %p116 = por %p114, %p115
      %p117 = scmp.ne.s32.totalorder %s106, %s107
      %p118 = scmp.eq.s32.totalorder %s68, 0
      %p119 = por %p117, %p118
      %p120 = scmp.ne.s32.totalorder %s106, %s107
      %p121 = scmp.eq.s32.totalorder %s69, 7
      %p122 = por %p120, %p121
      %p124 = scmp.ne.s32.totalorder %s107, %s123
      %p125 = scmp.eq.s32.totalorder %s69, 0
      %p126 = por %p124, %p125
      %s127 = smul.u32 %s71, 8
      %s128 = sadd.s32 %s127, 1
      %s129 = sshra.s32 %s128, 7
      %s130 = sand.u32 %s128, 127
      %s131 = sadd.s32 %s129, %s70
      %s132 = smul.u32 %s131, 128
      %s133 = sshra.s32 %s128, 7
      %s134 = sand.u32 %s128, 127
      %s135 = sadd.s32 %s132, %s134
      %s136 = sld [smem:[#allocation3 + %s135]]
      %s137 = smul.u32 %s78, 8
      %s138 = sadd.s32 %s137, 1
      %s139 = sshra.s32 %s138, 7
      %s140 = sand.u32 %s138, 127
      %s141 = sadd.s32 %s139, %s82
      %s142 = smul.u32 %s141, 128
      %s143 = sshra.s32 %s138, 7
      %s144 = sand.u32 %s138, 127
      %s145 = sadd.s32 %s142, %s144
      %s146 = sld [smem:[#allocation3 + %s145]]
      %s147 = ssub.s32 %s136, %s146
      %p148 = scmp.eq.s32.totalorder %s147, 0
      %s150 = sadd.s32 %s149, 1
      %s151 = scalar_select %p148, %s149, %s150
      %p154 = pneg %p148
      %p155 = scmp.eq.s32.totalorder %s63, 7
      %p156 = por %p154, %p155
      %p157 = scmp.ne.s32.totalorder %s149, %s152
      %p158 = scmp.eq.s32.totalorder %s63, 0
      %p159 = por %p157, %p158
      %p160 = scmp.ne.s32.totalorder %s149, %s152
      %p161 = scmp.eq.s32.totalorder %s68, 7
      %p162 = por %p160, %p161
      %p163 = scmp.ne.s32.totalorder %s152, %s153
      %p164 = scmp.eq.s32.totalorder %s68, 0
      %p165 = por %p163, %p164
      %p166 = scmp.ne.s32.totalorder %s152, %s153
      %p167 = scmp.eq.s32.totalorder %s69, 7
      %p168 = por %p166, %p167
      %p170 = scmp.ne.s32.totalorder %s153, %s169
      %p171 = scmp.eq.s32.totalorder %s69, 0
      %p172 = por %p170, %p171
      %s173 = smul.u32 %s71, 8
      %s174 = sadd.s32 %s173, 2
      %s175 = sshra.s32 %s174, 7
      %s176 = sand.u32 %s174, 127
      %s177 = sadd.s32 %s175, %s70
      %s178 = smul.u32 %s177, 128
      %s179 = sshra.s32 %s174, 7
      %s180 = sand.u32 %s174, 127
      %s181 = sadd.s32 %s178, %s180
      %s182 = sld [smem:[#allocation3 + %s181]]
      %s183 = smul.u32 %s78, 8
      %s184 = sadd.s32 %s183, 2
      %s185 = sshra.s32 %s184, 7
      %s186 = sand.u32 %s184, 127
      %s187 = sadd.s32 %s185, %s82
      %s188 = smul.u32 %s187, 128
      %s189 = sshra.s32 %s184, 7
      %s190 = sand.u32 %s184, 127
      %s191 = sadd.s32 %s188, %s190
      %s192 = sld [smem:[#allocation3 + %s191]]
      %s193 = ssub.s32 %s182, %s192
      %p194 = scmp.eq.s32.totalorder %s193, 0
      %s196 = sadd.s32 %s195, 1
      %s197 = scalar_select %p194, %s195, %s196
      %p200 = pneg %p194
      %p201 = scmp.eq.s32.totalorder %s63, 7
      %p202 = por %p200, %p201
      %p203 = scmp.ne.s32.totalorder %s195, %s198
      %p204 = scmp.eq.s32.totalorder %s63, 0
      %p205 = por %p203, %p204
      %p206 = scmp.ne.s32.totalorder %s195, %s198
      %p207 = scmp.eq.s32.totalorder %s68, 7
      %p208 = por %p206, %p207
      %p209 = scmp.ne.s32.totalorder %s198, %s199
      %p210 = scmp.eq.s32.totalorder %s68, 0
      %p211 = por %p209, %p210
      %p212 = scmp.ne.s32.totalorder %s198, %s199
      %p213 = scmp.eq.s32.totalorder %s69, 7
      %p214 = por %p212, %p213
      %p216 = scmp.ne.s32.totalorder %s199, %s215
      %p217 = scmp.eq.s32.totalorder %s69, 0
      %p218 = por %p216, %p217
      %s219 = smul.u32 %s71, 8
      %s220 = sadd.s32 %s219, 3
      %s221 = sshra.s32 %s220, 7
      %s222 = sand.u32 %s220, 127
      %s223 = sadd.s32 %s221, %s70
      %s224 = smul.u32 %s223, 128
      %s225 = sshra.s32 %s220, 7
      %s226 = sand.u32 %s220, 127
      %s227 = sadd.s32 %s224, %s226
      %s228 = sld [smem:[#allocation3 + %s227]]
      %s229 = smul.u32 %s78, 8
      %s230 = sadd.s32 %s229, 3
      %s231 = sshra.s32 %s230, 7
      %s232 = sand.u32 %s230, 127
      %s233 = sadd.s32 %s231, %s82
      %s234 = smul.u32 %s233, 128
      %s235 = sshra.s32 %s230, 7
      %s236 = sand.u32 %s230, 127
      %s237 = sadd.s32 %s234, %s236
      %s238 = sld [smem:[#allocation3 + %s237]]
      %s239 = ssub.s32 %s228, %s238
      %p240 = scmp.eq.s32.totalorder %s239, 0
      %s242 = sadd.s32 %s241, 1
      %s243 = scalar_select %p240, %s241, %s242
      %p246 = pneg %p240
      %p247 = scmp.eq.s32.totalorder %s63, 7
      %p248 = por %p246, %p247
      %p249 = scmp.ne.s32.totalorder %s241, %s244
      %p250 = scmp.eq.s32.totalorder %s63, 0
      %p251 = por %p249, %p250
      %p252 = scmp.ne.s32.totalorder %s241, %s244
      %p253 = scmp.eq.s32.totalorder %s68, 7
      %p254 = por %p252, %p253
      %p255 = scmp.ne.s32.totalorder %s244, %s245
      %p256 = scmp.eq.s32.totalorder %s68, 0
      %p257 = por %p255, %p256
      %p258 = scmp.ne.s32.totalorder %s244, %s245
      %p259 = scmp.eq.s32.totalorder %s69, 7
      %p260 = por %p258, %p259
      %p262 = scmp.ne.s32.totalorder %s245, %s261
      %p263 = scmp.eq.s32.totalorder %s69, 0
      %p264 = por %p262, %p263
      %s265 = smul.u32 %s71, 8
      %s266 = sadd.s32 %s265, 4
      %s267 = sshra.s32 %s266, 7
      %s268 = sand.u32 %s266, 127
      %s269 = sadd.s32 %s267, %s70
      %s270 = smul.u32 %s269, 128
      %s271 = sshra.s32 %s266, 7
      %s272 = sand.u32 %s266, 127
      %s273 = sadd.s32 %s270, %s272
      %s274 = sld [smem:[#allocation3 + %s273]]
      %s275 = smul.u32 %s78, 8
      %s276 = sadd.s32 %s275, 4
      %s277 = sshra.s32 %s276, 7
      %s278 = sand.u32 %s276, 127
      %s279 = sadd.s32 %s277, %s82
      %s280 = smul.u32 %s279, 128
      %s281 = sshra.s32 %s276, 7
      %s282 = sand.u32 %s276, 127
      %s283 = sadd.s32 %s280, %s282
      %s284 = sld [smem:[#allocation3 + %s283]]
      %s285 = ssub.s32 %s274, %s284
      %p286 = scmp.eq.s32.totalorder %s285, 0
      %s288 = sadd.s32 %s287, 1
      %s289 = scalar_select %p286, %s287, %s288
      %p292 = pneg %p286
      %p293 = scmp.eq.s32.totalorder %s63, 7
      %p294 = por %p292, %p293
      %p295 = scmp.ne.s32.totalorder %s287, %s290
      %p296 = scmp.eq.s32.totalorder %s63, 0
      %p297 = por %p295, %p296
      %p298 = scmp.ne.s32.totalorder %s287, %s290
      %p299 = scmp.eq.s32.totalorder %s68, 7
      %p300 = por %p298, %p299
      %p301 = scmp.ne.s32.totalorder %s290, %s291
      %p302 = scmp.eq.s32.totalorder %s68, 0
      %p303 = por %p301, %p302
      %p304 = scmp.ne.s32.totalorder %s290, %s291
      %p305 = scmp.eq.s32.totalorder %s69, 7
      %p306 = por %p304, %p305
      %p308 = scmp.ne.s32.totalorder %s291, %s307
      %p309 = scmp.eq.s32.totalorder %s69, 0
      %p310 = por %p308, %p309
      %s311 = smul.u32 %s71, 8
      %s312 = sadd.s32 %s311, 5
      %s313 = sshra.s32 %s312, 7
      %s314 = sand.u32 %s312, 127
      %s315 = sadd.s32 %s313, %s70
      %s316 = smul.u32 %s315, 128
      %s317 = sshra.s32 %s312, 7
      %s318 = sand.u32 %s312, 127
      %s319 = sadd.s32 %s316, %s318
      %s320 = sld [smem:[#allocation3 + %s319]]
      %s321 = smul.u32 %s78, 8
      %s322 = sadd.s32 %s321, 5
      %s323 = sshra.s32 %s322, 7
      %s324 = sand.u32 %s322, 127
      %s325 = sadd.s32 %s323, %s82
      %s326 = smul.u32 %s325, 128
      %s327 = sshra.s32 %s322, 7
      %s328 = sand.u32 %s322, 127
      %s329 = sadd.s32 %s326, %s328
      %s330 = sld [smem:[#allocation3 + %s329]]
      %s331 = ssub.s32 %s320, %s330
      %p332 = scmp.eq.s32.totalorder %s331, 0
      %s334 = sadd.s32 %s333, 1
      %s335 = scalar_select %p332, %s333, %s334
      %p338 = pneg %p332
      %p339 = scmp.eq.s32.totalorder %s63, 7
      %p340 = por %p338, %p339
      %p341 = scmp.ne.s32.totalorder %s333, %s336
      %p342 = scmp.eq.s32.totalorder %s63, 0
      %p343 = por %p341, %p342
      %p344 = scmp.ne.s32.totalorder %s333, %s336
      %p345 = scmp.eq.s32.totalorder %s68, 7
      %p346 = por %p344, %p345
      %p347 = scmp.ne.s32.totalorder %s336, %s337
      %p348 = scmp.eq.s32.totalorder %s68, 0
      %p349 = por %p347, %p348
      %p350 = scmp.ne.s32.totalorder %s336, %s337
      %p351 = scmp.eq.s32.totalorder %s69, 7
      %p352 = por %p350, %p351
      %p354 = scmp.ne.s32.totalorder %s337, %s353
      %p355 = scmp.eq.s32.totalorder %s69, 0
      %p356 = por %p354, %p355
      %s357 = smul.u32 %s71, 8
      %s358 = sadd.s32 %s357, 6
      %s359 = sshra.s32 %s358, 7
      %s360 = sand.u32 %s358, 127
      %s361 = sadd.s32 %s359, %s70
      %s362 = smul.u32 %s361, 128
      %s363 = sshra.s32 %s358, 7
      %s364 = sand.u32 %s358, 127
      %s365 = sadd.s32 %s362, %s364
      %s366 = sld [smem:[#allocation3 + %s365]]
      %s367 = smul.u32 %s78, 8
      %s368 = sadd.s32 %s367, 6
      %s369 = sshra.s32 %s368, 7
      %s370 = sand.u32 %s368, 127
      %s371 = sadd.s32 %s369, %s82
      %s372 = smul.u32 %s371, 128
      %s373 = sshra.s32 %s368, 7
      %s374 = sand.u32 %s368, 127
      %s375 = sadd.s32 %s372, %s374
      %s376 = sld [smem:[#allocation3 + %s375]]
      %s377 = ssub.s32 %s366, %s376
      %p378 = scmp.eq.s32.totalorder %s377, 0
      %s380 = sadd.s32 %s379, 1
      %s381 = scalar_select %p378, %s379, %s380
      %p384 = pneg %p378
      %p385 = scmp.eq.s32.totalorder %s63, 7
      %p386 = por %p384, %p385
      %p387 = scmp.ne.s32.totalorder %s379, %s382
      %p388 = scmp.eq.s32.totalorder %s63, 0
      %p389 = por %p387, %p388
      %p390 = scmp.ne.s32.totalorder %s379, %s382
      %p391 = scmp.eq.s32.totalorder %s68, 7
      %p392 = por %p390, %p391
      %p393 = scmp.ne.s32.totalorder %s382, %s383
      %p394 = scmp.eq.s32.totalorder %s68, 0
      %p395 = por %p393, %p394
      %p396 = scmp.ne.s32.totalorder %s382, %s383
      %p397 = scmp.eq.s32.totalorder %s69, 7
      %p398 = por %p396, %p397
      %p400 = scmp.ne.s32.totalorder %s383, %s399
      %p401 = scmp.eq.s32.totalorder %s69, 0
      %p402 = por %p400, %p401
      %s403 = smul.u32 %s71, 8
      %s404 = sadd.s32 %s403, 7
      %s405 = sshra.s32 %s404, 7
      %s406 = sand.u32 %s404, 127
      %s407 = sadd.s32 %s405, %s70
      %s408 = smul.u32 %s407, 128
      %s409 = sshra.s32 %s404, 7
      %s410 = sand.u32 %s404, 127
      %s411 = sadd.s32 %s408, %s410
      %s412 = sld [smem:[#allocation3 + %s411]]
      %s413 = smul.u32 %s78, 8
      %s414 = sadd.s32 %s413, 7
      %s415 = sshra.s32 %s414, 7
      %s416 = sand.u32 %s414, 127
      %s417 = sadd.s32 %s415, %s82
      %s418 = smul.u32 %s417, 128
      %s419 = sshra.s32 %s414, 7
      %s420 = sand.u32 %s414, 127
      %s421 = sadd.s32 %s418, %s420
      %s422 = sld [smem:[#allocation3 + %s421]]
      %s423 = ssub.s32 %s412, %s422
      %p424 = scmp.eq.s32.totalorder %s423, 0
      %s426 = sadd.s32 %s425, 1
      %s427 = scalar_select %p424, %s425, %s426
      %p430 = pneg %p424
      %p431 = scmp.eq.s32.totalorder %s63, 7
      %p432 = por %p430, %p431
      %p433 = scmp.ne.s32.totalorder %s425, %s428
      %p434 = scmp.eq.s32.totalorder %s63, 0
      %p435 = por %p433, %p434
      %p436 = scmp.ne.s32.totalorder %s425, %s428
      %p437 = scmp.eq.s32.totalorder %s68, 7
      %p438 = por %p436, %p437
      %p439 = scmp.ne.s32.totalorder %s428, %s429
      %p440 = scmp.eq.s32.totalorder %s68, 0
      %p441 = por %p439, %p440
      %p442 = scmp.ne.s32.totalorder %s428, %s429
      %p443 = scmp.eq.s32.totalorder %s69, 7
      %p444 = por %p442, %p443
      %p446 = scmp.ne.s32.totalorder %s429, %s445
      %p447 = scmp.eq.s32.totalorder %s69, 0
      %p448 = por %p446, %p447
      %s449 = smul.u32 %s71, 8
      %s450 = sshra.s32 %s449, 7
      %s451 = sand.u32 %s449, 127
      %s452 = sadd.s32 %s450, %s70
      %s453 = smul.u32 %s452, 128
      %s454 = sshra.s32 %s449, 7
      %s455 = sand.u32 %s449, 127
      %s456 = sadd.s32 %s453, %s455
      %s457 = sld [smem:[#allocation3 + %s456]]
      %s458 = smul.u32 %s78, 8
      %s459 = sshra.s32 %s458, 7
      %s460 = sand.u32 %s458, 127
      %s461 = sadd.s32 %s459, %s82
      %s462 = smul.u32 %s461, 128
      %s463 = sshra.s32 %s458, 7
      %s464 = sand.u32 %s458, 127
      %s465 = sadd.s32 %s462, %s464
      %s466 = sld [smem:[#allocation3 + %s465]]
      %s467 = ssub.s32 %s457, %s466
      %p468 = scmp.eq.s32.totalorder %s467, 0
      %s470 = sadd.s32 %s469, 1
      %s471 = scalar_select %p468, %s469, %s470
      %p474 = pneg %p468
      %p475 = scmp.eq.s32.totalorder %s63, 7
      %p476 = por %p474, %p475
      %p477 = scmp.ne.s32.totalorder %s469, %s472
      %p478 = scmp.eq.s32.totalorder %s63, 0
      %p479 = por %p477, %p478
      %p480 = scmp.ne.s32.totalorder %s469, %s472
      %p481 = scmp.eq.s32.totalorder %s68, 7
      %p482 = por %p480, %p481
      %p483 = scmp.ne.s32.totalorder %s472, %s473
      %p484 = scmp.eq.s32.totalorder %s68, 0
      %p485 = por %p483, %p484
      %p486 = scmp.ne.s32.totalorder %s472, %s473
      %p487 = scmp.eq.s32.totalorder %s69, 7
      %p488 = por %p486, %p487
      %p490 = scmp.ne.s32.totalorder %s473, %s489
      %p491 = scmp.eq.s32.totalorder %s69, 0
      %p492 = por %p490, %p491
      %s493 = smul.u32 %s71, 8
      %s494 = sadd.s32 %s493, 1
      %s495 = sshra.s32 %s494, 7
      %s496 = sand.u32 %s494, 127
      %s497 = sadd.s32 %s495, %s70
      %s498 = smul.u32 %s497, 128
      %s499 = sshra.s32 %s494, 7
      %s500 = sand.u32 %s494, 127
      %s501 = sadd.s32 %s498, %s500
      %s502 = sld [smem:[#allocation3 + %s501]]
      %s503 = smul.u32 %s78, 8
      %s504 = sadd.s32 %s503, 1
      %s505 = sshra.s32 %s504, 7
      %s506 = sand.u32 %s504, 127
      %s507 = sadd.s32 %s505, %s82
      %s508 = smul.u32 %s507, 128
      %s509 = sshra.s32 %s504, 7
      %s510 = sand.u32 %s504, 127
      %s511 = sadd.s32 %s508, %s510
      %s512 = sld [smem:[#allocation3 + %s511]]
      %s513 = ssub.s32 %s502, %s512
      %p514 = scmp.eq.s32.totalorder %s513, 0
      %s516 = sadd.s32 %s515, 1
      %s517 = scalar_select %p514, %s515, %s516
      %p520 = pneg %p514
      %p521 = scmp.eq.s32.totalorder %s63, 7
      %p522 = por %p520, %p521
      %p523 = scmp.ne.s32.totalorder %s515, %s518
      %p524 = scmp.eq.s32.totalorder %s63, 0
      %p525 = por %p523, %p524
      %p526 = scmp.ne.s32.totalorder %s515, %s518
      %p527 = scmp.eq.s32.totalorder %s68, 7
      %p528 = por %p526, %p527
      %p529 = scmp.ne.s32.totalorder %s518, %s519
      %p530 = scmp.eq.s32.totalorder %s68, 0
      %p531 = por %p529, %p530
      %p532 = scmp.ne.s32.totalorder %s518, %s519
      %p533 = scmp.eq.s32.totalorder %s69, 7
      %p534 = por %p532, %p533
      %p536 = scmp.ne.s32.totalorder %s519, %s535
      %p537 = scmp.eq.s32.totalorder %s69, 0
      %p538 = por %p536, %p537
      %s539 = smul.u32 %s71, 8
      %s540 = sadd.s32 %s539, 2
      %s541 = sshra.s32 %s540, 7
      %s542 = sand.u32 %s540, 127
      %s543 = sadd.s32 %s541, %s70
      %s544 = smul.u32 %s543, 128
      %s545 = sshra.s32 %s540, 7
      %s546 = sand.u32 %s540, 127
      %s547 = sadd.s32 %s544, %s546
      %s548 = sld [smem:[#allocation3 + %s547]]
      %s549 = smul.u32 %s78, 8
      %s550 = sadd.s32 %s549, 2
      %s551 = sshra.s32 %s550, 7
      %s552 = sand.u32 %s550, 127
      %s553 = sadd.s32 %s551, %s82
      %s554 = smul.u32 %s553, 128
      %s555 = sshra.s32 %s550, 7
      %s556 = sand.u32 %s550, 127
      %s557 = sadd.s32 %s554, %s556
      %s558 = sld [smem:[#allocation3 + %s557]]
      %s559 = ssub.s32 %s548, %s558
      %p560 = scmp.eq.s32.totalorder %s559, 0
      %s562 = sadd.s32 %s561, 1
      %s563 = scalar_select %p560, %s561, %s562
      %p566 = pneg %p560
      %p567 = scmp.eq.s32.totalorder %s63, 7
      %p568 = por %p566, %p567
      %p569 = scmp.ne.s32.totalorder %s561, %s564
      %p570 = scmp.eq.s32.totalorder %s63, 0
      %p571 = por %p569, %p570
      %p572 = scmp.ne.s32.totalorder %s561, %s564
      %p573 = scmp.eq.s32.totalorder %s68, 7
      %p574 = por %p572, %p573
      %p575 = scmp.ne.s32.totalorder %s564, %s565
      %p576 = scmp.eq.s32.totalorder %s68, 0
      %p577 = por %p575, %p576
      %p578 = scmp.ne.s32.totalorder %s564, %s565
      %p579 = scmp.eq.s32.totalorder %s69, 7
      %p580 = por %p578, %p579
      %p582 = scmp.ne.s32.totalorder %s565, %s581
      %p583 = scmp.eq.s32.totalorder %s69, 0
      %p584 = por %p582, %p583
      %s585 = smul.u32 %s71, 8
      %s586 = sadd.s32 %s585, 3
      %s587 = sshra.s32 %s586, 7
      %s588 = sand.u32 %s586, 127
      %s589 = sadd.s32 %s587, %s70
      %s590 = smul.u32 %s589, 128
      %s591 = sshra.s32 %s586, 7
      %s592 = sand.u32 %s586, 127
      %s593 = sadd.s32 %s590, %s592
      %s594 = sld [smem:[#allocation3 + %s593]]
      %s595 = smul.u32 %s78, 8
      %s596 = sadd.s32 %s595, 3
      %s597 = sshra.s32 %s596, 7
      %s598 = sand.u32 %s596, 127
      %s599 = sadd.s32 %s597, %s82
      %s600 = smul.u32 %s599, 128
      %s601 = sshra.s32 %s596, 7
      %s602 = sand.u32 %s596, 127
      %s603 = sadd.s32 %s600, %s602
      %s604 = sld [smem:[#allocation3 + %s603]]
      %s605 = ssub.s32 %s594, %s604
      %p606 = scmp.eq.s32.totalorder %s605, 0
      %s608 = sadd.s32 %s607, 1
      %s609 = scalar_select %p606, %s607, %s608
      %p612 = pneg %p606
      %p613 = scmp.eq.s32.totalorder %s63, 7
      %p614 = por %p612, %p613
      %p615 = scmp.ne.s32.totalorder %s607, %s610
      %p616 = scmp.eq.s32.totalorder %s63, 0
      %p617 = por %p615, %p616
      %p618 = scmp.ne.s32.totalorder %s607, %s610
      %p619 = scmp.eq.s32.totalorder %s68, 7
      %p620 = por %p618, %p619
      %p621 = scmp.ne.s32.totalorder %s610, %s611
      %p622 = scmp.eq.s32.totalorder %s68, 0
      %p623 = por %p621, %p622
      %p624 = scmp.ne.s32.totalorder %s610, %s611
      %p625 = scmp.eq.s32.totalorder %s69, 7
      %p626 = por %p624, %p625
      %p628 = scmp.ne.s32.totalorder %s611, %s627
      %p629 = scmp.eq.s32.totalorder %s69, 0
      %p630 = por %p628, %p629
      %s631 = smul.u32 %s71, 8
      %s632 = sadd.s32 %s631, 4
      %s633 = sshra.s32 %s632, 7
      %s634 = sand.u32 %s632, 127
      %s635 = sadd.s32 %s633, %s70
      %s636 = smul.u32 %s635, 128
      %s637 = sshra.s32 %s632, 7
      %s638 = sand.u32 %s632, 127
      %s639 = sadd.s32 %s636, %s638
      %s640 = sld [smem:[#allocation3 + %s639]]
      %s641 = smul.u32 %s78, 8
      %s642 = sadd.s32 %s641, 4
      %s643 = sshra.s32 %s642, 7
      %s644 = sand.u32 %s642, 127
      %s645 = sadd.s32 %s643, %s82
      %s646 = smul.u32 %s645, 128
      %s647 = sshra.s32 %s642, 7
      %s648 = sand.u32 %s642, 127
      %s649 = sadd.s32 %s646, %s648
      %s650 = sld [smem:[#allocation3 + %s649]]
      %s651 = ssub.s32 %s640, %s650
      %p652 = scmp.eq.s32.totalorder %s651, 0
      %s654 = sadd.s32 %s653, 1
      %s655 = scalar_select %p652, %s653, %s654
      %p658 = pneg %p652
      %p659 = scmp.eq.s32.totalorder %s63, 7
      %p660 = por %p658, %p659
      %p661 = scmp.ne.s32.totalorder %s653, %s656
      %p662 = scmp.eq.s32.totalorder %s63, 0
      %p663 = por %p661, %p662
      %p664 = scmp.ne.s32.totalorder %s653, %s656
      %p665 = scmp.eq.s32.totalorder %s68, 7
      %p666 = por %p664, %p665
      %p667 = scmp.ne.s32.totalorder %s656, %s657
      %p668 = scmp.eq.s32.totalorder %s68, 0
      %p669 = por %p667, %p668
      %p670 = scmp.ne.s32.totalorder %s656, %s657
      %p671 = scmp.eq.s32.totalorder %s69, 7
      %p672 = por %p670, %p671
      %p674 = scmp.ne.s32.totalorder %s657, %s673
      %p675 = scmp.eq.s32.totalorder %s69, 0
      %p676 = por %p674, %p675
      %s677 = smul.u32 %s71, 8
      %s678 = sadd.s32 %s677, 5
      %s679 = sshra.s32 %s678, 7
      %s680 = sand.u32 %s678, 127
      %s681 = sadd.s32 %s679, %s70
      %s682 = smul.u32 %s681, 128
      %s683 = sshra.s32 %s678, 7
      %s684 = sand.u32 %s678, 127
      %s685 = sadd.s32 %s682, %s684
      %s686 = sld [smem:[#allocation3 + %s685]]
      %s687 = smul.u32 %s78, 8
      %s688 = sadd.s32 %s687, 5
      %s689 = sshra.s32 %s688, 7
      %s690 = sand.u32 %s688, 127
      %s691 = sadd.s32 %s689, %s82
      %s692 = smul.u32 %s691, 128
      %s693 = sshra.s32 %s688, 7
      %s694 = sand.u32 %s688, 127
      %s695 = sadd.s32 %s692, %s694
      %s696 = sld [smem:[#allocation3 + %s695]]
      %s697 = ssub.s32 %s686, %s696
      %p698 = scmp.eq.s32.totalorder %s697, 0
      %s700 = sadd.s32 %s699, 1
      %s701 = scalar_select %p698, %s699, %s700
      %p704 = pneg %p698
      %p705 = scmp.eq.s32.totalorder %s63, 7
      %p706 = por %p704, %p705
      %p707 = scmp.ne.s32.totalorder %s699, %s702
      %p708 = scmp.eq.s32.totalorder %s63, 0
      %p709 = por %p707, %p708
      %p710 = scmp.ne.s32.totalorder %s699, %s702
      %p711 = scmp.eq.s32.totalorder %s68, 7
      %p712 = por %p710, %p711
      %p713 = scmp.ne.s32.totalorder %s702, %s703
      %p714 = scmp.eq.s32.totalorder %s68, 0
      %p715 = por %p713, %p714
      %p716 = scmp.ne.s32.totalorder %s702, %s703
      %p717 = scmp.eq.s32.totalorder %s69, 7
      %p718 = por %p716, %p717
      %p720 = scmp.ne.s32.totalorder %s703, %s719
      %p721 = scmp.eq.s32.totalorder %s69, 0
      %p722 = por %p720, %p721
      %s723 = smul.u32 %s71, 8
      %s724 = sadd.s32 %s723, 6
      %s725 = sshra.s32 %s724, 7
      %s726 = sand.u32 %s724, 127
      %s727 = sadd.s32 %s725, %s70
      %s728 = smul.u32 %s727, 128
      %s729 = sshra.s32 %s724, 7
      %s730 = sand.u32 %s724, 127
      %s731 = sadd.s32 %s728, %s730
      %s732 = sld [smem:[#allocation3 + %s731]]
      %s733 = smul.u32 %s78, 8
      %s734 = sadd.s32 %s733, 6
      %s735 = sshra.s32 %s734, 7
      %s736 = sand.u32 %s734, 127
      %s737 = sadd.s32 %s735, %s82
      %s738 = smul.u32 %s737, 128
      %s739 = sshra.s32 %s734, 7
      %s740 = sand.u32 %s734, 127
      %s741 = sadd.s32 %s738, %s740
      %s742 = sld [smem:[#allocation3 + %s741]]
      %s743 = ssub.s32 %s732, %s742
      %p744 = scmp.eq.s32.totalorder %s743, 0
      %s746 = sadd.s32 %s745, 1
      %s747 = scalar_select %p744, %s745, %s746
      %p750 = pneg %p744
      %p751 = scmp.eq.s32.totalorder %s63, 7
      %p752 = por %p750, %p751
      %p753 = scmp.ne.s32.totalorder %s745, %s748
      %p754 = scmp.eq.s32.totalorder %s63, 0
      %p755 = por %p753, %p754
      %p756 = scmp.ne.s32.totalorder %s745, %s748
      %p757 = scmp.eq.s32.totalorder %s68, 7
      %p758 = por %p756, %p757
      %p759 = scmp.ne.s32.totalorder %s748, %s749
      %p760 = scmp.eq.s32.totalorder %s68, 0
      %p761 = por %p759, %p760
      %p762 = scmp.ne.s32.totalorder %s748, %s749
      %p763 = scmp.eq.s32.totalorder %s69, 7
      %p764 = por %p762, %p763
      %p766 = scmp.ne.s32.totalorder %s749, %s765
      %p767 = scmp.eq.s32.totalorder %s69, 0
      %p768 = por %p766, %p767
      %s769 = smul.u32 %s71, 8
      %s770 = sadd.s32 %s769, 7
      %s771 = sshra.s32 %s770, 7
      %s772 = sand.u32 %s770, 127
      %s773 = sadd.s32 %s771, %s70
      %s774 = smul.u32 %s773, 128
      %s775 = sshra.s32 %s770, 7
      %s776 = sand.u32 %s770, 127
      %s777 = sadd.s32 %s774, %s776
      %s778 = sld [smem:[#allocation3 + %s777]]
      %s779 = smul.u32 %s78, 8
      %s780 = sadd.s32 %s779, 7
      %s781 = sshra.s32 %s780, 7
      %s782 = sand.u32 %s780, 127
      %s783 = sadd.s32 %s781, %s82
      %s784 = smul.u32 %s783, 128
      %s785 = sshra.s32 %s780, 7
      %s786 = sand.u32 %s780, 127
      %s787 = sadd.s32 %s784, %s786
      %s788 = sld [smem:[#allocation3 + %s787]]
      %s789 = ssub.s32 %s778, %s788
      %p790 = scmp.eq.s32.totalorder %s789, 0
      %s792 = sadd.s32 %s791, 1
      %s793 = scalar_select %p790, %s791, %s792
      %p796 = pneg %p790
      %p797 = scmp.eq.s32.totalorder %s63, 7
      %p798 = por %p796, %p797
      %p799 = scmp.ne.s32.totalorder %s791, %s794
      %p800 = scmp.eq.s32.totalorder %s63, 0
      %p801 = por %p799, %p800
      %p802 = scmp.ne.s32.totalorder %s791, %s794
      %p803 = scmp.eq.s32.totalorder %s68, 7
      %p804 = por %p802, %p803
      %p805 = scmp.ne.s32.totalorder %s794, %s795
      %p806 = scmp.eq.s32.totalorder %s68, 0
      %p807 = por %p805, %p806
      %p808 = scmp.ne.s32.totalorder %s794, %s795
      %p809 = scmp.eq.s32.totalorder %s69, 7
      %p810 = por %p808, %p809
      %p812 = scmp.ne.s32.totalorder %s795, %s811
      %p813 = scmp.eq.s32.totalorder %s69, 0
      %p814 = por %p812, %p813
      %s815 = ssub.s32 %s70, %s82
      %p816 = scmp.eq.s32.totalorder %s815, 0
      %s818 = sadd.s32 %s817, 1
      %s819 = scalar_select %p816, %s817, %s818
      %p822 = pneg %p816
      %p823 = scmp.eq.s32.totalorder %s63, 7
      %p824 = por %p822, %p823
      %p825 = scmp.ne.s32.totalorder %s817, %s820
      %p826 = scmp.eq.s32.totalorder %s63, 0
      %p827 = por %p825, %p826
      %p828 = scmp.ne.s32.totalorder %s817, %s820
      %p829 = scmp.eq.s32.totalorder %s68, 7
      %p830 = por %p828, %p829
      %p831 = scmp.ne.s32.totalorder %s820, %s821
      %p832 = scmp.eq.s32.totalorder %s68, 0
      %p833 = por %p831, %p832
      %p834 = scmp.ne.s32.totalorder %s820, %s821
      %p835 = scmp.eq.s32.totalorder %s69, 7
      %p836 = por %p834, %p835
      %p838 = scmp.ne.s32.totalorder %s821, %s837
      %p839 = scmp.eq.s32.totalorder %s69, 0
      %p840 = por %p838, %p839
      %p841 = scmp.le.s32.totalorder 1, %s63
      %p842 = scmp.lt.s32.totalorder %s63, 9
      %p843 = pnand %p841, %p842
      %p844 = pneg %p843
      // Predicated region
      $region9: #{tpu_custom_call.1} parent=5 // pred_check
        _
      $region10: #{tpu_custom_call.1} parent=5 // pred_check_branch
        %846 = sbr.rel (%p843) target = $region12
      $region11: #{tpu_custom_call.1} parent=5 // pred_region
        %s847 = ssub.s32 %s63, 1
      $region12: #{tpu_custom_call.1} parent=5 // pred_fallthru
        _
      %p848 = scmp.lt.s32.totalorder %s63, 8
      // Predicated region
      $region13: #{tpu_custom_call.1} parent=5 // pred_check
        %p849 = pneg %p848
      $region14: #{tpu_custom_call.1} parent=5 // pred_check_branch
        %851 = sbr.rel (%p849) target = $region16
      $region15: #{tpu_custom_call.1} parent=5 // pred_region
        // Predicated region
        $region17: #{tpu_custom_call.1} parent=15 // pred_check
          %p852 = pneg %p113
        $region18: #{tpu_custom_call.1} parent=15 // pred_check_branch
          %854 = sbr.rel (%p852) target = $region20
        $region19: #{tpu_custom_call.1} parent=15 // pred_region
          %s855 = smul.u32 %s71, 8
          %s856 = sshra.s32 %s855, 7
          %s857 = sand.u32 %s855, 127
          %s858 = sadd.s32 %s856, %s70
          %s859 = smul.u32 %s858, 128
          %s860 = sshra.s32 %s855, 7
          %s861 = sand.u32 %s855, 127
          %s862 = sadd.s32 %s859, %s861
          %s863 = sld [smem:[#allocation3 + %s862]]
          %p864 = scmp.lt.s32.totalorder %s863, 15
          %s865 = scalar_select %p864, %s863, 15
          %s866 = scalar_lea.vmem %s5, %s865
          %s867 = smul.u32 %s71, 8
          %s868 = sshra.s32 %s867, 7
          %s869 = sand.u32 %s867, 127
          %s870 = sadd.s32 %s868, %s70
          %s871 = smul.u32 %s870, 128
          %s872 = sshra.s32 %s867, 7
          %s873 = sand.u32 %s867, 127
          %s874 = sadd.s32 %s871, %s873
          %s875 = sld [smem:[#allocation3 + %s874]]
        $region20: #{tpu_custom_call.1} parent=15 // pred_fallthru
          _
        // Predicated region
        $region21: #{tpu_custom_call.1} parent=15 // pred_check
          %p876 = pneg %p159
        $region22: #{tpu_custom_call.1} parent=15 // pred_check_branch
          %878 = sbr.rel (%p876) target = $region24
        $region23: #{tpu_custom_call.1} parent=15 // pred_region
          %s879 = sand.u32 %s149, 1
          %s880 = scalar_lea.sflag [#allocation9], %s879
          %s881 = sand.u32 %s149, 1
          %s882 = scalar_lea.vmem [#allocation8], %s881
          %s883 = smul.u32 %s71, 8
          %s884 = sadd.s32 %s883, 1
          %s885 = sshra.s32 %s884, 7
          %s886 = sand.u32 %s884, 127
          %s887 = sadd.s32 %s885, %s70
          %s888 = smul.u32 %s887, 128
          %s889 = sshra.s32 %s884, 7
          %s890 = sand.u32 %s884, 127
          %s891 = sadd.s32 %s888, %s890
          %s892 = sld [smem:[#allocation3 + %s891]]
          %s894 = ssub.s32 16, 16
          %895 = vsyncadd %s880, %s894
          %s896 = smul.addr %s892, 16
          %s897 = scalar_lea.hbm %s6, %s896
          %s899 = sshll.u32 %s882, 4
          %s900 = int_to_ptr.vmem [resolvable:$true] %s899
          %902 = dma.hbm_to_vmem [thread:$0]  %s897, 16, %s900, %s880
        $region24: #{tpu_custom_call.1} parent=15 // pred_fallthru
          _
        // Predicated region
        $region25: #{tpu_custom_call.1} parent=15 // pred_check
          %p903 = pneg %p205
        $region26: #{tpu_custom_call.1} parent=15 // pred_check_branch
          %905 = sbr.rel (%p903) target = $region28
        $region27: #{tpu_custom_call.1} parent=15 // pred_region
          %s906 = sand.u32 %s63, 1
          %s907 = scalar_lea.sflag [#allocation12], %s906
          %s908 = sand.u32 %s195, 1
          %s909 = scalar_lea.vmem [#allocation11], %s908
          %s910 = smul.u32 %s71, 8
          %s911 = sadd.s32 %s910, 2
          %s912 = sshra.s32 %s911, 7
          %s913 = sand.u32 %s911, 127
          %s914 = sadd.s32 %s912, %s70
          %s915 = smul.u32 %s914, 128
          %s916 = sshra.s32 %s911, 7
          %s917 = sand.u32 %s911, 127
          %s918 = sadd.s32 %s915, %s917
          %s919 = sld [smem:[#allocation3 + %s918]]
          %s921 = ssub.s32 16, 16
          %922 = vsyncadd %s907, %s921
          %s923 = smul.addr %s919, 16
          %s924 = scalar_lea.hbm %s7, %s923
          %s926 = sshll.u32 %s909, 4
          %s927 = int_to_ptr.vmem [resolvable:$true] %s926
          %929 = dma.hbm_to_vmem [thread:$0]  %s924, 16, %s927, %s907
        $region28: #{tpu_custom_call.1} parent=15 // pred_fallthru
          _
        // Predicated region
        $region29: #{tpu_custom_call.1} parent=15 // pred_check
          %p930 = pneg %p251
        $region30: #{tpu_custom_call.1} parent=15 // pred_check_branch
          %932 = sbr.rel (%p930) target = $region32
        $region31: #{tpu_custom_call.1} parent=15 // pred_region
          %s933 = sand.u32 %s63, 1
          %s934 = scalar_lea.sflag [#allocation12], %s933
          %s935 = sand.u32 %s241, 1
          %s936 = scalar_lea.vmem [#allocation13], %s935
          %s937 = smul.u32 %s71, 8
          %s938 = sadd.s32 %s937, 3
          %s939 = sshra.s32 %s938, 7
          %s940 = sand.u32 %s938, 127
          %s941 = sadd.s32 %s939, %s70
          %s942 = smul.u32 %s941, 128
          %s943 = sshra.s32 %s938, 7
          %s944 = sand.u32 %s938, 127
          %s945 = sadd.s32 %s942, %s944
          %s946 = sld [smem:[#allocation3 + %s945]]
          %s948 = ssub.s32 16, 16
          %949 = vsyncadd %s934, %s948
          %s950 = smul.addr %s946, 16
          %s951 = scalar_lea.hbm %s8, %s950
          %s953 = sshll.u32 %s936, 4
          %s954 = int_to_ptr.vmem [resolvable:$true] %s953
          %956 = dma.hbm_to_vmem [thread:$0]  %s951, 16, %s954, %s934
        $region32: #{tpu_custom_call.1} parent=15 // pred_fallthru
          _
        // Predicated region
        $region33: #{tpu_custom_call.1} parent=15 // pred_check
          %p957 = pneg %p297
        $region34: #{tpu_custom_call.1} parent=15 // pred_check_branch
          %959 = sbr.rel (%p957) target = $region36
        $region35: #{tpu_custom_call.1} parent=15 // pred_region
          %s960 = smul.u32 %s71, 8
          %s961 = sadd.s32 %s960, 4
          %s962 = sshra.s32 %s961, 7
          %s963 = sand.u32 %s961, 127
          %s964 = sadd.s32 %s962, %s70
          %s965 = smul.u32 %s964, 128
          %s966 = sshra.s32 %s961, 7
          %s967 = sand.u32 %s961, 127
          %s968 = sadd.s32 %s965, %s967
          %s969 = sld [smem:[#allocation3 + %s968]]
          %p970 = scmp.lt.s32.totalorder %s969, 15
          %s971 = scalar_select %p970, %s969, 15
          %s972 = scalar_lea.vmem %s9, %s971
          %s973 = smul.u32 %s71, 8
          %s974 = sadd.s32 %s973, 4
          %s975 = sshra.s32 %s974, 7
          %s976 = sand.u32 %s974, 127
          %s977 = sadd.s32 %s975, %s70
          %s978 = smul.u32 %s977, 128
          %s979 = sshra.s32 %s974, 7
          %s980 = sand.u32 %s974, 127
          %s981 = sadd.s32 %s978, %s980
          %s982 = sld [smem:[#allocation3 + %s981]]
        $region36: #{tpu_custom_call.1} parent=15 // pred_fallthru
          _
        // Predicated region
        $region37: #{tpu_custom_call.1} parent=15 // pred_check
          %p983 = pneg %p343
        $region38: #{tpu_custom_call.1} parent=15 // pred_check_branch
          %985 = sbr.rel (%p983) target = $region40
        $region39: #{tpu_custom_call.1} parent=15 // pred_region
          %s986 = sand.u32 %s63, 1
          %s987 = scalar_lea.sflag [#allocation15], %s986
          %s988 = sand.u32 %s333, 1
          %s989 = scalar_lea.vmem [#allocation14], %s988
          %s990 = smul.u32 %s71, 8
          %s991 = sadd.s32 %s990, 5
          %s992 = sshra.s32 %s991, 7
          %s993 = sand.u32 %s991, 127
          %s994 = sadd.s32 %s992, %s70
          %s995 = smul.u32 %s994, 128
          %s996 = sshra.s32 %s991, 7
          %s997 = sand.u32 %s991, 127
          %s998 = sadd.s32 %s995, %s997
          %s999 = sld [smem:[#allocation3 + %s998]]
          %s1001 = ssub.s32 16, 16
          %1002 = vsyncadd %s987, %s1001
          %s1003 = smul.addr %s999, 16
          %s1004 = scalar_lea.hbm %s10, %s1003
          %s1006 = sshll.u32 %s989, 4
          %s1007 = int_to_ptr.vmem [resolvable:$true] %s1006
          %1009 = dma.hbm_to_vmem [thread:$0]  %s1004, 16, %s1007, %s987
        $region40: #{tpu_custom_call.1} parent=15 // pred_fallthru
          _
        // Predicated region
        $region41: #{tpu_custom_call.1} parent=15 // pred_check
          %p1010 = pneg %p389
        $region42: #{tpu_custom_call.1} parent=15 // pred_check_branch
          %1012 = sbr.rel (%p1010) target = $region44
        $region43: #{tpu_custom_call.1} parent=15 // pred_region
          %s1013 = sand.u32 %s63, 1
          %s1014 = scalar_lea.sflag [#allocation15], %s1013
          %s1015 = sand.u32 %s379, 1
          %s1016 = scalar_lea.vmem [#allocation16], %s1015
          %s1017 = smul.u32 %s71, 8
          %s1018 = sadd.s32 %s1017, 6
          %s1019 = sshra.s32 %s1018, 7
          %s1020 = sand.u32 %s1018, 127
          %s1021 = sadd.s32 %s1019, %s70
          %s1022 = smul.u32 %s1021, 128
          %s1023 = sshra.s32 %s1018, 7
          %s1024 = sand.u32 %s1018, 127
          %s1025 = sadd.s32 %s1022, %s1024
          %s1026 = sld [smem:[#allocation3 + %s1025]]
          %s1028 = ssub.s32 16, 16
          %1029 = vsyncadd %s1014, %s1028
          %s1030 = smul.addr %s1026, 16
          %s1031 = scalar_lea.hbm %s11, %s1030
          %s1033 = sshll.u32 %s1016, 4
          %s1034 = int_to_ptr.vmem [resolvable:$true] %s1033
          %1036 = dma.hbm_to_vmem [thread:$0]  %s1031, 16, %s1034, %s1014
        $region44: #{tpu_custom_call.1} parent=15 // pred_fallthru
          _
        // Predicated region
        $region45: #{tpu_custom_call.1} parent=15 // pred_check
          %p1037 = pneg %p435
        $region46: #{tpu_custom_call.1} parent=15 // pred_check_branch
          %1039 = sbr.rel (%p1037) target = $region48
        $region47: #{tpu_custom_call.1} parent=15 // pred_region
          %s1040 = sand.u32 %s63, 1
          %s1041 = scalar_lea.sflag [#allocation18], %s1040
          %s1042 = sand.u32 %s425, 1
          %s1043 = scalar_lea.vmem [#allocation17], %s1042
          %s1044 = smul.u32 %s71, 8
          %s1045 = sadd.s32 %s1044, 7
          %s1046 = sshra.s32 %s1045, 7
          %s1047 = sand.u32 %s1045, 127
          %s1048 = sadd.s32 %s1046, %s70
          %s1049 = smul.u32 %s1048, 128
          %s1050 = sshra.s32 %s1045, 7
          %s1051 = sand.u32 %s1045, 127
          %s1052 = sadd.s32 %s1049, %s1051
          %s1053 = sld [smem:[#allocation3 + %s1052]]
          %s1055 = ssub.s32 16, 16
          %1056 = vsyncadd %s1041, %s1055
          %s1057 = smul.addr %s1053, 16
          %s1058 = scalar_lea.hbm %s12, %s1057
          %s1060 = sshll.u32 %s1043, 4
          %s1061 = int_to_ptr.vmem [resolvable:$true] %s1060
          %1063 = dma.hbm_to_vmem [thread:$0]  %s1058, 16, %s1061, %s1041
        $region48: #{tpu_custom_call.1} parent=15 // pred_fallthru
          _
        // Predicated region
        $region49: #{tpu_custom_call.1} parent=15 // pred_check
          %p1064 = pneg %p479
        $region50: #{tpu_custom_call.1} parent=15 // pred_check_branch
          %1066 = sbr.rel (%p1064) target = $region52
        $region51: #{tpu_custom_call.1} parent=15 // pred_region
          %s1067 = smul.u32 %s71, 8
          %s1068 = sshra.s32 %s1067, 7
          %s1069 = sand.u32 %s1067, 127
          %s1070 = sadd.s32 %s1068, %s70
          %s1071 = smul.u32 %s1070, 128
          %s1072 = sshra.s32 %s1067, 7
          %s1073 = sand.u32 %s1067, 127
          %s1074 = sadd.s32 %s1071, %s1073
          %s1075 = sld [smem:[#allocation3 + %s1074]]
          %p1076 = scmp.lt.s32.totalorder %s1075, 15
          %s1077 = scalar_select %p1076, %s1075, 15
          %s1078 = scalar_lea.vmem %s13, %s1077
          %s1079 = smul.u32 %s71, 8
          %s1080 = sshra.s32 %s1079, 7
          %s1081 = sand.u32 %s1079, 127
          %s1082 = sadd.s32 %s1080, %s70
          %s1083 = smul.u32 %s1082, 128
          %s1084 = sshra.s32 %s1079, 7
          %s1085 = sand.u32 %s1079, 127
          %s1086 = sadd.s32 %s1083, %s1085
          %s1087 = sld [smem:[#allocation3 + %s1086]]
        $region52: #{tpu_custom_call.1} parent=15 // pred_fallthru
          _
        // Predicated region
        $region53: #{tpu_custom_call.1} parent=15 // pred_check
          %p1088 = pneg %p525
        $region54: #{tpu_custom_call.1} parent=15 // pred_check_branch
          %1090 = sbr.rel (%p1088) target = $region56
        $region55: #{tpu_custom_call.1} parent=15 // pred_region
          %s1091 = sand.u32 %s63, 1
          %s1092 = scalar_lea.sflag [#allocation18], %s1091
          %s1093 = sand.u32 %s515, 1
          %s1094 = scalar_lea.vmem [#allocation19], %s1093
          %s1095 = smul.u32 %s71, 8
          %s1096 = sadd.s32 %s1095, 1
          %s1097 = sshra.s32 %s1096, 7
          %s1098 = sand.u32 %s1096, 127
          %s1099 = sadd.s32 %s1097, %s70
          %s1100 = smul.u32 %s1099, 128
          %s1101 = sshra.s32 %s1096, 7
          %s1102 = sand.u32 %s1096, 127
          %s1103 = sadd.s32 %s1100, %s1102
          %s1104 = sld [smem:[#allocation3 + %s1103]]
          %s1106 = ssub.s32 16, 16
          %1107 = vsyncadd %s1092, %s1106
          %s1108 = smul.addr %s1104, 16
          %s1109 = scalar_lea.hbm %s14, %s1108
          %s1111 = sshll.u32 %s1094, 4
          %s1112 = int_to_ptr.vmem [resolvable:$true] %s1111
          %1114 = dma.hbm_to_vmem [thread:$0]  %s1109, 16, %s1112, %s1092
        $region56: #{tpu_custom_call.1} parent=15 // pred_fallthru
          _
        // Predicated region
        $region57: #{tpu_custom_call.1} parent=15 // pred_check
          %p1115 = pneg %p571
        $region58: #{tpu_custom_call.1} parent=15 // pred_check_branch
          %1117 = sbr.rel (%p1115) target = $region60
        $region59: #{tpu_custom_call.1} parent=15 // pred_region
          %s1118 = sand.u32 %s63, 1
          %s1119 = scalar_lea.sflag [#allocation21], %s1118
          %s1120 = sand.u32 %s561, 1
          %s1121 = scalar_lea.vmem [#allocation20], %s1120
          %s1122 = smul.u32 %s71, 8
          %s1123 = sadd.s32 %s1122, 2
          %s1124 = sshra.s32 %s1123, 7
          %s1125 = sand.u32 %s1123, 127
          %s1126 = sadd.s32 %s1124, %s70
          %s1127 = smul.u32 %s1126, 128
          %s1128 = sshra.s32 %s1123, 7
          %s1129 = sand.u32 %s1123, 127
          %s1130 = sadd.s32 %s1127, %s1129
          %s1131 = sld [smem:[#allocation3 + %s1130]]
          %s1133 = ssub.s32 16, 16
          %1134 = vsyncadd %s1119, %s1133
          %s1135 = smul.addr %s1131, 16
          %s1136 = scalar_lea.hbm %s15, %s1135
          %s1138 = sshll.u32 %s1121, 4
          %s1139 = int_to_ptr.vmem [resolvable:$true] %s1138
          %1141 = dma.hbm_to_vmem [thread:$0]  %s1136, 16, %s1139, %s1119
        $region60: #{tpu_custom_call.1} parent=15 // pred_fallthru
          _
        // Predicated region
        $region61: #{tpu_custom_call.1} parent=15 // pred_check
          %p1142 = pneg %p617
        $region62: #{tpu_custom_call.1} parent=15 // pred_check_branch
          %1144 = sbr.rel (%p1142) target = $region64
        $region63: #{tpu_custom_call.1} parent=15 // pred_region
          %s1145 = sand.u32 %s63, 1
          %s1146 = scalar_lea.sflag [#allocation21], %s1145
          %s1147 = sand.u32 %s607, 1
          %s1148 = scalar_lea.vmem [#allocation22], %s1147
          %s1149 = smul.u32 %s71, 8
          %s1150 = sadd.s32 %s1149, 3
          %s1151 = sshra.s32 %s1150, 7
          %s1152 = sand.u32 %s1150, 127
          %s1153 = sadd.s32 %s1151, %s70
          %s1154 = smul.u32 %s1153, 128
          %s1155 = sshra.s32 %s1150, 7
          %s1156 = sand.u32 %s1150, 127
          %s1157 = sadd.s32 %s1154, %s1156
          %s1158 = sld [smem:[#allocation3 + %s1157]]
          %s1160 = ssub.s32 16, 16
          %1161 = vsyncadd %s1146, %s1160
          %s1162 = smul.addr %s1158, 16
          %s1163 = scalar_lea.hbm %s16, %s1162
          %s1165 = sshll.u32 %s1148, 4
          %s1166 = int_to_ptr.vmem [resolvable:$true] %s1165
          %1168 = dma.hbm_to_vmem [thread:$0]  %s1163, 16, %s1166, %s1146
        $region64: #{tpu_custom_call.1} parent=15 // pred_fallthru
          _
        // Predicated region
        $region65: #{tpu_custom_call.1} parent=15 // pred_check
          %p1169 = pneg %p663
        $region66: #{tpu_custom_call.1} parent=15 // pred_check_branch
          %1171 = sbr.rel (%p1169) target = $region68
        $region67: #{tpu_custom_call.1} parent=15 // pred_region
          %s1172 = smul.u32 %s71, 8
          %s1173 = sadd.s32 %s1172, 4
          %s1174 = sshra.s32 %s1173, 7
          %s1175 = sand.u32 %s1173, 127
          %s1176 = sadd.s32 %s1174, %s70
          %s1177 = smul.u32 %s1176, 128
          %s1178 = sshra.s32 %s1173, 7
          %s1179 = sand.u32 %s1173, 127
          %s1180 = sadd.s32 %s1177, %s1179
          %s1181 = sld [smem:[#allocation3 + %s1180]]
          %p1182 = scmp.lt.s32.totalorder %s1181, 15
          %s1183 = scalar_select %p1182, %s1181, 15
          %s1184 = scalar_lea.vmem %s17, %s1183
          %s1185 = smul.u32 %s71, 8
          %s1186 = sadd.s32 %s1185, 4
          %s1187 = sshra.s32 %s1186, 7
          %s1188 = sand.u32 %s1186, 127
          %s1189 = sadd.s32 %s1187, %s70
          %s1190 = smul.u32 %s1189, 128
          %s1191 = sshra.s32 %s1186, 7
          %s1192 = sand.u32 %s1186, 127
          %s1193 = sadd.s32 %s1190, %s1192
          %s1194 = sld [smem:[#allocation3 + %s1193]]
        $region68: #{tpu_custom_call.1} parent=15 // pred_fallthru
          _
        // Predicated region
        $region69: #{tpu_custom_call.1} parent=15 // pred_check
          %p1195 = pneg %p709
        $region70: #{tpu_custom_call.1} parent=15 // pred_check_branch
          %1197 = sbr.rel (%p1195) target = $region72
        $region71: #{tpu_custom_call.1} parent=15 // pred_region
          %s1198 = sand.u32 %s63, 1
          %s1199 = scalar_lea.sflag [#allocation24], %s1198
          %s1200 = sand.u32 %s699, 1
          %s1201 = scalar_lea.vmem [#allocation23], %s1200
          %s1202 = smul.u32 %s71, 8
          %s1203 = sadd.s32 %s1202, 5
          %s1204 = sshra.s32 %s1203, 7
          %s1205 = sand.u32 %s1203, 127
          %s1206 = sadd.s32 %s1204, %s70
          %s1207 = smul.u32 %s1206, 128
          %s1208 = sshra.s32 %s1203, 7
          %s1209 = sand.u32 %s1203, 127
          %s1210 = sadd.s32 %s1207, %s1209
          %s1211 = sld [smem:[#allocation3 + %s1210]]
          %s1213 = ssub.s32 16, 16
          %1214 = vsyncadd %s1199, %s1213
          %s1215 = smul.addr %s1211, 16
          %s1216 = scalar_lea.hbm %s18, %s1215
          %s1218 = sshll.u32 %s1201, 4
          %s1219 = int_to_ptr.vmem [resolvable:$true] %s1218
          %1221 = dma.hbm_to_vmem [thread:$0]  %s1216, 16, %s1219, %s1199
        $region72: #{tpu_custom_call.1} parent=15 // pred_fallthru
          _
        // Predicated region
        $region73: #{tpu_custom_call.1} parent=15 // pred_check
          %p1222 = pneg %p755
        $region74: #{tpu_custom_call.1} parent=15 // pred_check_branch
          %1224 = sbr.rel (%p1222) target = $region76
        $region75: #{tpu_custom_call.1} parent=15 // pred_region
          %s1225 = sand.u32 %s63, 1
          %s1226 = scalar_lea.sflag [#allocation24], %s1225
          %s1227 = sand.u32 %s745, 1
          %s1228 = scalar_lea.vmem [#allocation25], %s1227
          %s1229 = smul.u32 %s71, 8
          %s1230 = sadd.s32 %s1229, 6
          %s1231 = sshra.s32 %s1230, 7
          %s1232 = sand.u32 %s1230, 127
          %s1233 = sadd.s32 %s1231, %s70
          %s1234 = smul.u32 %s1233, 128
          %s1235 = sshra.s32 %s1230, 7
          %s1236 = sand.u32 %s1230, 127
          %s1237 = sadd.s32 %s1234, %s1236
          %s1238 = sld [smem:[#allocation3 + %s1237]]
          %s1240 = ssub.s32 16, 16
          %1241 = vsyncadd %s1226, %s1240
          %s1242 = smul.addr %s1238, 16
          %s1243 = scalar_lea.hbm %s19, %s1242
          %s1245 = sshll.u32 %s1228, 4
          %s1246 = int_to_ptr.vmem [resolvable:$true] %s1245
          %1248 = dma.hbm_to_vmem [thread:$0]  %s1243, 16, %s1246, %s1226
        $region76: #{tpu_custom_call.1} parent=15 // pred_fallthru
          _
        // Predicated region
        $region77: #{tpu_custom_call.1} parent=15 // pred_check
          %p1249 = pneg %p801
        $region78: #{tpu_custom_call.1} parent=15 // pred_check_branch
          %1251 = sbr.rel (%p1249) target = $region80
        $region79: #{tpu_custom_call.1} parent=15 // pred_region
          %s1252 = sand.u32 %s791, 1
          %s1253 = scalar_lea.sflag [#allocation27], %s1252
          %s1254 = sand.u32 %s791, 1
          %s1255 = scalar_lea.vmem [#allocation26], %s1254
          %s1256 = smul.u32 %s71, 8
          %s1257 = sadd.s32 %s1256, 7
          %s1258 = sshra.s32 %s1257, 7
          %s1259 = sand.u32 %s1257, 127
          %s1260 = sadd.s32 %s1258, %s70
          %s1261 = smul.u32 %s1260, 128
          %s1262 = sshra.s32 %s1257, 7
          %s1263 = sand.u32 %s1257, 127
          %s1264 = sadd.s32 %s1261, %s1263
          %s1265 = sld [smem:[#allocation3 + %s1264]]
          %s1267 = ssub.s32 16, 16
          %1268 = vsyncadd %s1253, %s1267
          %s1269 = smul.addr %s1265, 16
          %s1270 = scalar_lea.hbm %s20, %s1269
          %s1272 = sshll.u32 %s1255, 4
          %s1273 = int_to_ptr.vmem [resolvable:$true] %s1272
          %1275 = dma.hbm_to_vmem [thread:$0]  %s1270, 16, %s1273, %s1253
        $region80: #{tpu_custom_call.1} parent=15 // pred_fallthru
          _
      $region16: #{tpu_custom_call.1} parent=5 // pred_fallthru
        _
      %p1276 = scmp.le.s32.totalorder 1, %s63
      %p1277 = scmp.lt.s32.totalorder %s63, 9
      %p1278 = pnand %p1276, %p1277
      %p1279 = pneg %p1278
      // Predicated region
      $region81: #{tpu_custom_call.1} parent=5 // pred_check
        _
      $region82: #{tpu_custom_call.1} parent=5 // pred_check_branch
        %1281 = sbr.rel (%p1278) target = $region84
      $region83: #{tpu_custom_call.1} parent=5 // pred_region
        %s1282 = ssub.s32 %s63, 1
        %s1283 = sand.u32 %s152, 1
        %s1284 = scalar_lea.sflag [#allocation9], %s1283
        %s1285 = sand.u32 %s152, 1
        %s1286 = scalar_lea.vmem [#allocation8], %s1285
        // Predicated region
        $region85: #{tpu_custom_call.1} parent=83 // pred_check
          %p1287 = pneg %p165
        $region86: #{tpu_custom_call.1} parent=83 // pred_check_branch
          %1289 = sbr.rel (%p1287) target = $region88
        $region87: #{tpu_custom_call.1} parent=83 // pred_region
          %1290 = dma.done %s1284, 16
        $region88: #{tpu_custom_call.1} parent=83 // pred_fallthru
          _
        %s1291 = sand.u32 %s68, 1
        %s1292 = scalar_lea.sflag [#allocation12], %s1291
        %s1293 = sand.u32 %s198, 1
        %s1294 = scalar_lea.vmem [#allocation11], %s1293
        // Predicated region
        $region89: #{tpu_custom_call.1} parent=83 // pred_check
          %p1295 = pneg %p211
        $region90: #{tpu_custom_call.1} parent=83 // pred_check_branch
          %1297 = sbr.rel (%p1295) target = $region92
        $region91: #{tpu_custom_call.1} parent=83 // pred_region
          %1298 = dma.done %s1292, 16
        $region92: #{tpu_custom_call.1} parent=83 // pred_fallthru
          _
        %s1299 = sand.u32 %s68, 1
        %s1300 = scalar_lea.sflag [#allocation12], %s1299
        %s1301 = sand.u32 %s244, 1
        %s1302 = scalar_lea.vmem [#allocation13], %s1301
        // Predicated region
        $region93: #{tpu_custom_call.1} parent=83 // pred_check
          %p1303 = pneg %p257
        $region94: #{tpu_custom_call.1} parent=83 // pred_check_branch
          %1305 = sbr.rel (%p1303) target = $region96
        $region95: #{tpu_custom_call.1} parent=83 // pred_region
          %1306 = dma.done %s1300, 16
        $region96: #{tpu_custom_call.1} parent=83 // pred_fallthru
          _
        %s1307 = sand.u32 %s68, 1
        %s1308 = scalar_lea.sflag [#allocation15], %s1307
        %s1309 = sand.u32 %s336, 1
        %s1310 = scalar_lea.vmem [#allocation14], %s1309
        // Predicated region
        $region97: #{tpu_custom_call.1} parent=83 // pred_check
          %p1311 = pneg %p349
        $region98: #{tpu_custom_call.1} parent=83 // pred_check_branch
          %1313 = sbr.rel (%p1311) target = $region100
        $region99: #{tpu_custom_call.1} parent=83 // pred_region
          %1314 = dma.done %s1308, 16
        $region100: #{tpu_custom_call.1} parent=83 // pred_fallthru
          _
        %s1315 = sand.u32 %s68, 1
        %s1316 = scalar_lea.sflag [#allocation15], %s1315
        %s1317 = sand.u32 %s382, 1
        %s1318 = scalar_lea.vmem [#allocation16], %s1317
        // Predicated region
        $region101: #{tpu_custom_call.1} parent=83 // pred_check
          %p1319 = pneg %p395
        $region102: #{tpu_custom_call.1} parent=83 // pred_check_branch
          %1321 = sbr.rel (%p1319) target = $region104
        $region103: #{tpu_custom_call.1} parent=83 // pred_region
          %1322 = dma.done %s1316, 16
        $region104: #{tpu_custom_call.1} parent=83 // pred_fallthru
          _
        %s1323 = sand.u32 %s68, 1
        %s1324 = scalar_lea.sflag [#allocation18], %s1323
        %s1325 = sand.u32 %s428, 1
        %s1326 = scalar_lea.vmem [#allocation17], %s1325
        // Predicated region
        $region105: #{tpu_custom_call.1} parent=83 // pred_check
          %p1327 = pneg %p441
        $region106: #{tpu_custom_call.1} parent=83 // pred_check_branch
          %1329 = sbr.rel (%p1327) target = $region108
        $region107: #{tpu_custom_call.1} parent=83 // pred_region
          %1330 = dma.done %s1324, 16
        $region108: #{tpu_custom_call.1} parent=83 // pred_fallthru
          _
        %s1331 = sand.u32 %s68, 1
        %s1332 = scalar_lea.sflag [#allocation18], %s1331
        %s1333 = sand.u32 %s518, 1
        %s1334 = scalar_lea.vmem [#allocation19], %s1333
        // Predicated region
        $region109: #{tpu_custom_call.1} parent=83 // pred_check
          %p1335 = pneg %p531
        $region110: #{tpu_custom_call.1} parent=83 // pred_check_branch
          %1337 = sbr.rel (%p1335) target = $region112
        $region111: #{tpu_custom_call.1} parent=83 // pred_region
          %1338 = dma.done %s1332, 16
        $region112: #{tpu_custom_call.1} parent=83 // pred_fallthru
          _
        %s1339 = sand.u32 %s68, 1
        %s1340 = scalar_lea.sflag [#allocation21], %s1339
        %s1341 = sand.u32 %s564, 1
        %s1342 = scalar_lea.vmem [#allocation20], %s1341
        // Predicated region
        $region113: #{tpu_custom_call.1} parent=83 // pred_check
          %p1343 = pneg %p577
        $region114: #{tpu_custom_call.1} parent=83 // pred_check_branch
          %1345 = sbr.rel (%p1343) target = $region116
        $region115: #{tpu_custom_call.1} parent=83 // pred_region
          %1346 = dma.done %s1340, 16
        $region116: #{tpu_custom_call.1} parent=83 // pred_fallthru
          _
        %s1347 = sand.u32 %s68, 1
        %s1348 = scalar_lea.sflag [#allocation21], %s1347
        %s1349 = sand.u32 %s610, 1
        %s1350 = scalar_lea.vmem [#allocation22], %s1349
        // Predicated region
        $region117: #{tpu_custom_call.1} parent=83 // pred_check
          %p1351 = pneg %p623
        $region118: #{tpu_custom_call.1} parent=83 // pred_check_branch
          %1353 = sbr.rel (%p1351) target = $region120
        $region119: #{tpu_custom_call.1} parent=83 // pred_region
          %1354 = dma.done %s1348, 16
        $region120: #{tpu_custom_call.1} parent=83 // pred_fallthru
          _
        %s1355 = sand.u32 %s68, 1
        %s1356 = scalar_lea.sflag [#allocation24], %s1355
        %s1357 = sand.u32 %s702, 1
        %s1358 = scalar_lea.vmem [#allocation23], %s1357
        // Predicated region
        $region121: #{tpu_custom_call.1} parent=83 // pred_check
          %p1359 = pneg %p715
        $region122: #{tpu_custom_call.1} parent=83 // pred_check_branch
          %1361 = sbr.rel (%p1359) target = $region124
        $region123: #{tpu_custom_call.1} parent=83 // pred_region
          %1362 = dma.done %s1356, 16
        $region124: #{tpu_custom_call.1} parent=83 // pred_fallthru
          _
        %s1363 = sand.u32 %s68, 1
        %s1364 = scalar_lea.sflag [#allocation24], %s1363
        %s1365 = sand.u32 %s748, 1
        %s1366 = scalar_lea.vmem [#allocation25], %s1365
        // Predicated region
        $region125: #{tpu_custom_call.1} parent=83 // pred_check
          %p1367 = pneg %p761
        $region126: #{tpu_custom_call.1} parent=83 // pred_check_branch
          %1369 = sbr.rel (%p1367) target = $region128
        $region127: #{tpu_custom_call.1} parent=83 // pred_region
          %1370 = dma.done %s1364, 16
        $region128: #{tpu_custom_call.1} parent=83 // pred_fallthru
          _
        %s1371 = sand.u32 %s794, 1
        %s1372 = scalar_lea.sflag [#allocation27], %s1371
        %s1373 = sand.u32 %s794, 1
        %s1374 = scalar_lea.vmem [#allocation26], %s1373
        // Predicated region
        $region129: #{tpu_custom_call.1} parent=83 // pred_check
          %p1375 = pneg %p807
        $region130: #{tpu_custom_call.1} parent=83 // pred_check_branch
          %1377 = sbr.rel (%p1375) target = $region132
        $region131: #{tpu_custom_call.1} parent=83 // pred_region
          %1378 = dma.done %s1372, 16
        $region132: #{tpu_custom_call.1} parent=83 // pred_fallthru
          _
        %s1379 = smul.u32 %s73, 8
        %s1380 = sshra.s32 %s1379, 7
        %s1381 = sand.u32 %s1379, 127
        %s1382 = sadd.s32 %s1380, %s72
        %s1383 = smul.u32 %s1382, 128
        %s1384 = sshra.s32 %s1379, 7
        %s1385 = sand.u32 %s1379, 127
        %s1386 = sadd.s32 %s1383, %s1385
        %s1387 = sld [smem:[#allocation3 + %s1386]]
        %p1388 = scmp.lt.s32.totalorder %s1387, 15
        %s1389 = scalar_select %p1388, %s1387, 15
        %s1390 = scalar_lea.vmem %s5, %s1389
        %p1391 = pneg %p119
        %p1392 = pneg %p116
        %s1393 = sand.u32 %s152, 1
        %s1394 = scalar_lea.sflag [#allocation9], %s1393
        %s1395 = sand.u32 %s152, 1
        %s1396 = scalar_lea.vmem [#allocation8], %s1395
        %p1397 = pneg %p165
        %p1398 = pneg %p162
        %s1399 = sand.u32 %s68, 1
        %s1400 = scalar_lea.sflag [#allocation12], %s1399
        %s1401 = sand.u32 %s198, 1
        %s1402 = scalar_lea.vmem [#allocation11], %s1401
        %p1403 = pneg %p211
        %p1404 = pneg %p208
        %s1405 = sand.u32 %s68, 1
        %s1406 = scalar_lea.sflag [#allocation12], %s1405
        %s1407 = sand.u32 %s244, 1
        %s1408 = scalar_lea.vmem [#allocation13], %s1407
        %p1409 = pneg %p257
        %p1410 = pneg %p254
        %s1411 = smul.u32 %s73, 8
        %s1412 = sadd.s32 %s1411, 4
        %s1413 = sshra.s32 %s1412, 7
        %s1414 = sand.u32 %s1412, 127
        %s1415 = sadd.s32 %s1413, %s72
        %s1416 = smul.u32 %s1415, 128
        %s1417 = sshra.s32 %s1412, 7
        %s1418 = sand.u32 %s1412, 127
        %s1419 = sadd.s32 %s1416, %s1418
        %s1420 = sld [smem:[#allocation3 + %s1419]]
        %p1421 = scmp.lt.s32.totalorder %s1420, 15
        %s1422 = scalar_select %p1421, %s1420, 15
        %s1423 = scalar_lea.vmem %s9, %s1422
        %p1424 = pneg %p303
        %p1425 = pneg %p300
        %s1426 = sand.u32 %s68, 1
        %s1427 = scalar_lea.sflag [#allocation15], %s1426
        %s1428 = sand.u32 %s336, 1
        %s1429 = scalar_lea.vmem [#allocation14], %s1428
        %p1430 = pneg %p349
        %p1431 = pneg %p346
        %s1432 = sand.u32 %s68, 1
        %s1433 = scalar_lea.sflag [#allocation15], %s1432
        %s1434 = sand.u32 %s382, 1
        %s1435 = scalar_lea.vmem [#allocation16], %s1434
        %p1436 = pneg %p395
        %p1437 = pneg %p392
        %s1438 = sand.u32 %s68, 1
        %s1439 = scalar_lea.sflag [#allocation18], %s1438
        %s1440 = sand.u32 %s428, 1
        %s1441 = scalar_lea.vmem [#allocation17], %s1440
        %p1442 = pneg %p441
        %p1443 = pneg %p438
        %s1444 = smul.u32 %s73, 8
        %s1445 = sshra.s32 %s1444, 7
        %s1446 = sand.u32 %s1444, 127
        %s1447 = sadd.s32 %s1445, %s72
        %s1448 = smul.u32 %s1447, 128
        %s1449 = sshra.s32 %s1444, 7
        %s1450 = sand.u32 %s1444, 127
        %s1451 = sadd.s32 %s1448, %s1450
        %s1452 = sld [smem:[#allocation3 + %s1451]]
        %p1453 = scmp.lt.s32.totalorder %s1452, 15
        %s1454 = scalar_select %p1453, %s1452, 15
        %s1455 = scalar_lea.vmem %s13, %s1454
        %p1456 = pneg %p485
        %p1457 = pneg %p482
        %s1458 = sand.u32 %s68, 1
        %s1459 = scalar_lea.sflag [#allocation18], %s1458
        %s1460 = sand.u32 %s518, 1
        %s1461 = scalar_lea.vmem [#allocation19], %s1460
        %p1462 = pneg %p531
        %p1463 = pneg %p528
        %s1464 = sand.u32 %s68, 1
        %s1465 = scalar_lea.sflag [#allocation21], %s1464
        %s1466 = sand.u32 %s564, 1
        %s1467 = scalar_lea.vmem [#allocation20], %s1466
        %p1468 = pneg %p577
        %p1469 = pneg %p574
        %s1470 = sand.u32 %s68, 1
        %s1471 = scalar_lea.sflag [#allocation21], %s1470
        %s1472 = sand.u32 %s610, 1
        %s1473 = scalar_lea.vmem [#allocation22], %s1472
        %p1474 = pneg %p623
        %p1475 = pneg %p620
        %s1476 = smul.u32 %s73, 8
        %s1477 = sadd.s32 %s1476, 4
        %s1478 = sshra.s32 %s1477, 7
        %s1479 = sand.u32 %s1477, 127
        %s1480 = sadd.s32 %s1478, %s72
        %s1481 = smul.u32 %s1480, 128
        %s1482 = sshra.s32 %s1477, 7
        %s1483 = sand.u32 %s1477, 127
        %s1484 = sadd.s32 %s1481, %s1483
        %s1485 = sld [smem:[#allocation3 + %s1484]]
        %p1486 = scmp.lt.s32.totalorder %s1485, 15
        %s1487 = scalar_select %p1486, %s1485, 15
        %s1488 = scalar_lea.vmem %s17, %s1487
        %p1489 = pneg %p669
        %p1490 = pneg %p666
        %s1491 = sand.u32 %s68, 1
        %s1492 = scalar_lea.sflag [#allocation24], %s1491
        %s1493 = sand.u32 %s702, 1
        %s1494 = scalar_lea.vmem [#allocation23], %s1493
        %p1495 = pneg %p715
        %p1496 = pneg %p712
        %s1497 = sand.u32 %s68, 1
        %s1498 = scalar_lea.sflag [#allocation24], %s1497
        %s1499 = sand.u32 %s748, 1
        %s1500 = scalar_lea.vmem [#allocation25], %s1499
        %p1501 = pneg %p761
        %p1502 = pneg %p758
        %s1503 = sand.u32 %s794, 1
        %s1504 = scalar_lea.sflag [#allocation27], %s1503
        %s1505 = sand.u32 %s794, 1
        %s1506 = scalar_lea.vmem [#allocation26], %s1505
        %p1507 = pneg %p807
        %p1508 = pneg %p804
        %p1509 = pneg %p833
        %p1510 = pneg %p830
        %s1511 = sand.u32 %s820, 1
        %s1512 = scalar_lea.sflag [#allocation10], %s1511
        %s1513 = sand.u32 %s820, 1
        %s1514 = scalar_lea.vmem [#allocation28], %s1513
        %s1515 = smul.u32 %s73, 8
        %s1516 = sshra.s32 %s1515, 7
        %s1517 = sand.u32 %s1515, 127
        %s1518 = sadd.s32 %s1516, %s72
        %s1519 = smul.u32 %s1518, 128
        %s1520 = sshra.s32 %s1515, 7
        %s1521 = sand.u32 %s1515, 127
        %s1522 = sadd.s32 %s1519, %s1521
        %s1523 = sld [smem:[#allocation3 + %s1522]]
        %p1524 = scmp.lt.s32.totalorder %s1523, 15
        %s1525 = scalar_select %p1524, %s1523, 15
        %s1526 = scalar_lea.vmem %s5, %s1525
        %s1527 = smul.u32 %s73, 8
        %s1528 = sshra.s32 %s1527, 7
        %s1529 = sand.u32 %s1527, 127
        %s1530 = sadd.s32 %s1528, %s72
        %s1531 = smul.u32 %s1530, 128
        %s1532 = sshra.s32 %s1527, 7
        %s1533 = sand.u32 %s1527, 127
        %s1534 = sadd.s32 %s1531, %s1533
        %s1535 = sld [smem:[#allocation3 + %s1534]]
        %s1536 = smul.u32 %s73, 8
        %s1537 = sadd.s32 %s1536, 1
        %s1538 = sshra.s32 %s1537, 7
        %s1539 = sand.u32 %s1537, 127
        %s1540 = sadd.s32 %s1538, %s72
        %s1541 = smul.u32 %s1540, 128
        %s1542 = sshra.s32 %s1537, 7
        %s1543 = sand.u32 %s1537, 127
        %s1544 = sadd.s32 %s1541, %s1543
        %s1545 = sld [smem:[#allocation3 + %s1544]]
        %s1546 = smul.u32 %s73, 8
        %s1547 = sadd.s32 %s1546, 2
        %s1548 = sshra.s32 %s1547, 7
        %s1549 = sand.u32 %s1547, 127
        %s1550 = sadd.s32 %s1548, %s72
        %s1551 = smul.u32 %s1550, 128
        %s1552 = sshra.s32 %s1547, 7
        %s1553 = sand.u32 %s1547, 127
        %s1554 = sadd.s32 %s1551, %s1553
        %s1555 = sld [smem:[#allocation3 + %s1554]]
        %s1556 = smul.u32 %s73, 8
        %s1557 = sadd.s32 %s1556, 3
        %s1558 = sshra.s32 %s1557, 7
        %s1559 = sand.u32 %s1557, 127
        %s1560 = sadd.s32 %s1558, %s72
        %s1561 = smul.u32 %s1560, 128
        %s1562 = sshra.s32 %s1557, 7
        %s1563 = sand.u32 %s1557, 127
        %s1564 = sadd.s32 %s1561, %s1563
        %s1565 = sld [smem:[#allocation3 + %s1564]]
        %s1566 = smul.u32 %s73, 8
        %s1567 = sadd.s32 %s1566, 4
        %s1568 = sshra.s32 %s1567, 7
        %s1569 = sand.u32 %s1567, 127
        %s1570 = sadd.s32 %s1568, %s72
        %s1571 = smul.u32 %s1570, 128
        %s1572 = sshra.s32 %s1567, 7
        %s1573 = sand.u32 %s1567, 127
        %s1574 = sadd.s32 %s1571, %s1573
        %s1575 = sld [smem:[#allocation3 + %s1574]]
        %p1576 = scmp.lt.s32.totalorder %s1575, 15
        %s1577 = scalar_select %p1576, %s1575, 15
        %s1578 = scalar_lea.vmem %s9, %s1577
        %s1579 = smul.u32 %s73, 8
        %s1580 = sadd.s32 %s1579, 4
        %s1581 = sshra.s32 %s1580, 7
        %s1582 = sand.u32 %s1580, 127
        %s1583 = sadd.s32 %s1581, %s72
        %s1584 = smul.u32 %s1583, 128
        %s1585 = sshra.s32 %s1580, 7
        %s1586 = sand.u32 %s1580, 127
        %s1587 = sadd.s32 %s1584, %s1586
        %s1588 = sld [smem:[#allocation3 + %s1587]]
        %s1589 = smul.u32 %s73, 8
        %s1590 = sadd.s32 %s1589, 5
        %s1591 = sshra.s32 %s1590, 7
        %s1592 = sand.u32 %s1590, 127
        %s1593 = sadd.s32 %s1591, %s72
        %s1594 = smul.u32 %s1593, 128
        %s1595 = sshra.s32 %s1590, 7
        %s1596 = sand.u32 %s1590, 127
        %s1597 = sadd.s32 %s1594, %s1596
        %s1598 = sld [smem:[#allocation3 + %s1597]]
        %s1599 = smul.u32 %s73, 8
        %s1600 = sadd.s32 %s1599, 6
        %s1601 = sshra.s32 %s1600, 7
        %s1602 = sand.u32 %s1600, 127
        %s1603 = sadd.s32 %s1601, %s72
        %s1604 = smul.u32 %s1603, 128
        %s1605 = sshra.s32 %s1600, 7
        %s1606 = sand.u32 %s1600, 127
        %s1607 = sadd.s32 %s1604, %s1606
        %s1608 = sld [smem:[#allocation3 + %s1607]]
        %s1609 = smul.u32 %s73, 8
        %s1610 = sadd.s32 %s1609, 7
        %s1611 = sshra.s32 %s1610, 7
        %s1612 = sand.u32 %s1610, 127
        %s1613 = sadd.s32 %s1611, %s72
        %s1614 = smul.u32 %s1613, 128
        %s1615 = sshra.s32 %s1610, 7
        %s1616 = sand.u32 %s1610, 127
        %s1617 = sadd.s32 %s1614, %s1616
        %s1618 = sld [smem:[#allocation3 + %s1617]]
        %s1619 = smul.u32 %s73, 8
        %s1620 = sshra.s32 %s1619, 7
        %s1621 = sand.u32 %s1619, 127
        %s1622 = sadd.s32 %s1620, %s72
        %s1623 = smul.u32 %s1622, 128
        %s1624 = sshra.s32 %s1619, 7
        %s1625 = sand.u32 %s1619, 127
        %s1626 = sadd.s32 %s1623, %s1625
        %s1627 = sld [smem:[#allocation3 + %s1626]]
        %p1628 = scmp.lt.s32.totalorder %s1627, 15
        %s1629 = scalar_select %p1628, %s1627, 15
        %s1630 = scalar_lea.vmem %s13, %s1629
        %s1631 = smul.u32 %s73, 8
        %s1632 = sshra.s32 %s1631, 7
        %s1633 = sand.u32 %s1631, 127
        %s1634 = sadd.s32 %s1632, %s72
        %s1635 = smul.u32 %s1634, 128
        %s1636 = sshra.s32 %s1631, 7
        %s1637 = sand.u32 %s1631, 127
        %s1638 = sadd.s32 %s1635, %s1637
        %s1639 = sld [smem:[#allocation3 + %s1638]]
        %s1640 = smul.u32 %s73, 8
        %s1641 = sadd.s32 %s1640, 1
        %s1642 = sshra.s32 %s1641, 7
        %s1643 = sand.u32 %s1641, 127
        %s1644 = sadd.s32 %s1642, %s72
        %s1645 = smul.u32 %s1644, 128
        %s1646 = sshra.s32 %s1641, 7
        %s1647 = sand.u32 %s1641, 127
        %s1648 = sadd.s32 %s1645, %s1647
        %s1649 = sld [smem:[#allocation3 + %s1648]]
        %s1650 = smul.u32 %s73, 8
        %s1651 = sadd.s32 %s1650, 2
        %s1652 = sshra.s32 %s1651, 7
        %s1653 = sand.u32 %s1651, 127
        %s1654 = sadd.s32 %s1652, %s72
        %s1655 = smul.u32 %s1654, 128
        %s1656 = sshra.s32 %s1651, 7
        %s1657 = sand.u32 %s1651, 127
        %s1658 = sadd.s32 %s1655, %s1657
        %s1659 = sld [smem:[#allocation3 + %s1658]]
        %s1660 = smul.u32 %s73, 8
        %s1661 = sadd.s32 %s1660, 3
        %s1662 = sshra.s32 %s1661, 7
        %s1663 = sand.u32 %s1661, 127
        %s1664 = sadd.s32 %s1662, %s72
        %s1665 = smul.u32 %s1664, 128
        %s1666 = sshra.s32 %s1661, 7
        %s1667 = sand.u32 %s1661, 127
        %s1668 = sadd.s32 %s1665, %s1667
        %s1669 = sld [smem:[#allocation3 + %s1668]]
        %s1670 = smul.u32 %s73, 8
        %s1671 = sadd.s32 %s1670, 4
        %s1672 = sshra.s32 %s1671, 7
        %s1673 = sand.u32 %s1671, 127
        %s1674 = sadd.s32 %s1672, %s72
        %s1675 = smul.u32 %s1674, 128
        %s1676 = sshra.s32 %s1671, 7
        %s1677 = sand.u32 %s1671, 127
        %s1678 = sadd.s32 %s1675, %s1677
        %s1679 = sld [smem:[#allocation3 + %s1678]]
        %p1680 = scmp.lt.s32.totalorder %s1679, 15
        %s1681 = scalar_select %p1680, %s1679, 15
        %s1682 = scalar_lea.vmem %s17, %s1681
        %s1683 = smul.u32 %s73, 8
        %s1684 = sadd.s32 %s1683, 4
        %s1685 = sshra.s32 %s1684, 7
        %s1686 = sand.u32 %s1684, 127
        %s1687 = sadd.s32 %s1685, %s72
        %s1688 = smul.u32 %s1687, 128
        %s1689 = sshra.s32 %s1684, 7
        %s1690 = sand.u32 %s1684, 127
        %s1691 = sadd.s32 %s1688, %s1690
        %s1692 = sld [smem:[#allocation3 + %s1691]]
        %s1693 = smul.u32 %s73, 8
        %s1694 = sadd.s32 %s1693, 5
        %s1695 = sshra.s32 %s1694, 7
        %s1696 = sand.u32 %s1694, 127
        %s1697 = sadd.s32 %s1695, %s72
        %s1698 = smul.u32 %s1697, 128
        %s1699 = sshra.s32 %s1694, 7
        %s1700 = sand.u32 %s1694, 127
        %s1701 = sadd.s32 %s1698, %s1700
        %s1702 = sld [smem:[#allocation3 + %s1701]]
        %s1703 = smul.u32 %s73, 8
        %s1704 = sadd.s32 %s1703, 6
        %s1705 = sshra.s32 %s1704, 7
        %s1706 = sand.u32 %s1704, 127
        %s1707 = sadd.s32 %s1705, %s72
        %s1708 = smul.u32 %s1707, 128
        %s1709 = sshra.s32 %s1704, 7
        %s1710 = sand.u32 %s1704, 127
        %s1711 = sadd.s32 %s1708, %s1710
        %s1712 = sld [smem:[#allocation3 + %s1711]]
        %s1713 = smul.u32 %s73, 8
        %s1714 = sadd.s32 %s1713, 7
        %s1715 = sshra.s32 %s1714, 7
        %s1716 = sand.u32 %s1714, 127
        %s1717 = sadd.s32 %s1715, %s72
        %s1718 = smul.u32 %s1717, 128
        %s1719 = sshra.s32 %s1714, 7
        %s1720 = sand.u32 %s1714, 127
        %s1721 = sadd.s32 %s1718, %s1720
        %s1722 = sld [smem:[#allocation3 + %s1721]]
        %p1723 = scmp.eq.s32.totalorder %s73, 0
        // Predicated region
        $region133: #{tpu_custom_call.1} parent=83 // pred_check
          %p1724 = pneg %p1723
        $region134: #{tpu_custom_call.1} parent=83 // pred_check_branch
          %1726 = sbr.rel (%p1724) target = $region136
        $region135: #{tpu_custom_call.1} parent=83 // pred_region
          %vm1727 = vcmask 122880
          %1728 = vst.msk [vmem:[%s1514] sm:$0x1] %vm1727, 0.0
        $region136: #{tpu_custom_call.1} parent=83 // pred_fallthru
          _
        %v1729 = vlaneseq
        %v1730 = vand.u32 %v1729, 127
        %s1731 = smul.u32 %s73, 8
        %v1732 = vld [vmem:[%s1526] sm:$0x1]
        %v1733 = vld [vmem:[%s1630] sm:$0x1]
        %s1734 = sshra.s32 %s1731, 7
        %s1735 = sand.u32 %s1731, 127
        %s1736 = sadd.s32 %s1734, %s72
        %s1737 = smul.u32 %s1736, 128
        %s1738 = sshra.s32 %s1731, 7
        %s1739 = sand.u32 %s1731, 127
        %s1740 = sadd.s32 %s1737, %s1739
        %s1741 = sld [smem:[#allocation5 + %s1740]]
        %s1742 = scvt.s32.f32 %s1741
        %s1743 = sld [smem:[#allocation6 + %s1740]]
        %s1744 = scvt.s32.f32 %s1743
        %s1745 = sld [smem:[#allocation7 + %s1740]]
        %s1746 = scvt.s32.f32 %s1745
        %s1747 = sld [smem:[#allocation4 + %s1740]]
        %v1748 = vstv %s1747
        %vm1749 = vcmp.eq.s32.totalorder %v1730, %v1748
        %v1750 = vsel %vm1749, 1, 0
        %v1751 = vcvt.s32.f32 %v1750
        %v1752 = vstv %s1742
        %v1753 = vmul.f32 %v1752, %v1732
        %v1754 = vstv %s1744
        %v1755 = vmul.f32 %v1754, %v1733
        %v1756 = vadd.f32 %v1753, %v1755
        %v1757 = vmin.f32 %v1732, %v1733
        %v1758 = vstv %s1746
        %v1759 = vmul.f32 %v1758, %v1757
        %v1760 = vadd.f32 %v1756, %v1759
        %v1761 = vmul.f32 %v1760, %v1751
        %v1762 = vadd.f32 %v1761, 0.0
        %s1763 = sadd.s32 %s1731, 1
        %v1764 = vld [vmem:[%s1286] sm:$0x1]
        %v1765 = vld [vmem:[%s1334] sm:$0x1]
        %s1766 = sshra.s32 %s1763, 7
        %s1767 = sand.u32 %s1763, 127
        %s1768 = sadd.s32 %s1766, %s72
        %s1769 = smul.u32 %s1768, 128
        %s1770 = sshra.s32 %s1763, 7
        %s1771 = sand.u32 %s1763, 127
        %s1772 = sadd.s32 %s1769, %s1771
        %s1773 = sld [smem:[#allocation5 + %s1772]]
        %s1774 = scvt.s32.f32 %s1773
        %s1775 = sld [smem:[#allocation6 + %s1772]]
        %s1776 = scvt.s32.f32 %s1775
        %s1777 = sld [smem:[#allocation7 + %s1772]]
        %s1778 = scvt.s32.f32 %s1777
        %s1779 = sld [smem:[#allocation4 + %s1772]]
        %v1780 = vstv %s1779
        %vm1781 = vcmp.eq.s32.totalorder %v1730, %v1780
        %v1782 = vsel %vm1781, 1, 0
        %v1783 = vcvt.s32.f32 %v1782
        %v1784 = vstv %s1774
        %v1785 = vmul.f32 %v1784, %v1764
        %v1786 = vstv %s1776
        %v1787 = vmul.f32 %v1786, %v1765
        %v1788 = vadd.f32 %v1785, %v1787
        %v1789 = vmin.f32 %v1764, %v1765
        %v1790 = vstv %s1778
        %v1791 = vmul.f32 %v1790, %v1789
        %v1792 = vadd.f32 %v1788, %v1791
        %v1793 = vmul.f32 %v1792, %v1783
        %v1794 = vadd.f32 %v1762, %v1793
        %s1795 = sadd.s32 %s1731, 2
        %v1796 = vld [vmem:[%s1294] sm:$0x1]
        %v1797 = vld [vmem:[%s1342] sm:$0x1]
        %s1798 = sshra.s32 %s1795, 7
        %s1799 = sand.u32 %s1795, 127
        %s1800 = sadd.s32 %s1798, %s72
        %s1801 = smul.u32 %s1800, 128
        %s1802 = sshra.s32 %s1795, 7
        %s1803 = sand.u32 %s1795, 127
        %s1804 = sadd.s32 %s1801, %s1803
        %s1805 = sld [smem:[#allocation5 + %s1804]]
        %s1806 = scvt.s32.f32 %s1805
        %s1807 = sld [smem:[#allocation6 + %s1804]]
        %s1808 = scvt.s32.f32 %s1807
        %s1809 = sld [smem:[#allocation7 + %s1804]]
        %s1810 = scvt.s32.f32 %s1809
        %s1811 = sld [smem:[#allocation4 + %s1804]]
        %v1812 = vstv %s1811
        %vm1813 = vcmp.eq.s32.totalorder %v1730, %v1812
        %v1814 = vsel %vm1813, 1, 0
        %v1815 = vcvt.s32.f32 %v1814
        %v1816 = vstv %s1806
        %v1817 = vmul.f32 %v1816, %v1796
        %v1818 = vstv %s1808
        %v1819 = vmul.f32 %v1818, %v1797
        %v1820 = vadd.f32 %v1817, %v1819
        %v1821 = vmin.f32 %v1796, %v1797
        %v1822 = vstv %s1810
        %v1823 = vmul.f32 %v1822, %v1821
        %v1824 = vadd.f32 %v1820, %v1823
        %v1825 = vmul.f32 %v1824, %v1815
        %v1826 = vadd.f32 %v1794, %v1825
        %s1827 = sadd.s32 %s1731, 3
        %v1828 = vld [vmem:[%s1302] sm:$0x1]
        %v1829 = vld [vmem:[%s1350] sm:$0x1]
        %s1830 = sshra.s32 %s1827, 7
        %s1831 = sand.u32 %s1827, 127
        %s1832 = sadd.s32 %s1830, %s72
        %s1833 = smul.u32 %s1832, 128
        %s1834 = sshra.s32 %s1827, 7
        %s1835 = sand.u32 %s1827, 127
        %s1836 = sadd.s32 %s1833, %s1835
        %s1837 = sld [smem:[#allocation5 + %s1836]]
        %s1838 = scvt.s32.f32 %s1837
        %s1839 = sld [smem:[#allocation6 + %s1836]]
        %s1840 = scvt.s32.f32 %s1839
        %s1841 = sld [smem:[#allocation7 + %s1836]]
        %s1842 = scvt.s32.f32 %s1841
        %s1843 = sld [smem:[#allocation4 + %s1836]]
        %v1844 = vstv %s1843
        %vm1845 = vcmp.eq.s32.totalorder %v1730, %v1844
        %v1846 = vsel %vm1845, 1, 0
        %v1847 = vcvt.s32.f32 %v1846
        %v1848 = vstv %s1838
        %v1849 = vmul.f32 %v1848, %v1828
        %v1850 = vstv %s1840
        %v1851 = vmul.f32 %v1850, %v1829
        %v1852 = vadd.f32 %v1849, %v1851
        %v1853 = vmin.f32 %v1828, %v1829
        %v1854 = vstv %s1842
        %v1855 = vmul.f32 %v1854, %v1853
        %v1856 = vadd.f32 %v1852, %v1855
        %v1857 = vmul.f32 %v1856, %v1847
        %v1858 = vadd.f32 %v1826, %v1857
        %s1859 = sadd.s32 %s1731, 4
        %v1860 = vld [vmem:[%s1578] sm:$0x1]
        %v1861 = vld [vmem:[%s1682] sm:$0x1]
        %s1862 = sshra.s32 %s1859, 7
        %s1863 = sand.u32 %s1859, 127
        %s1864 = sadd.s32 %s1862, %s72
        %s1865 = smul.u32 %s1864, 128
        %s1866 = sshra.s32 %s1859, 7
        %s1867 = sand.u32 %s1859, 127
        %s1868 = sadd.s32 %s1865, %s1867
        %s1869 = sld [smem:[#allocation5 + %s1868]]
        %s1870 = scvt.s32.f32 %s1869
        %s1871 = sld [smem:[#allocation6 + %s1868]]
        %s1872 = scvt.s32.f32 %s1871
        %s1873 = sld [smem:[#allocation7 + %s1868]]
        %s1874 = scvt.s32.f32 %s1873
        %s1875 = sld [smem:[#allocation4 + %s1868]]
        %v1876 = vstv %s1875
        %vm1877 = vcmp.eq.s32.totalorder %v1730, %v1876
        %v1878 = vsel %vm1877, 1, 0
        %v1879 = vcvt.s32.f32 %v1878
        %v1880 = vstv %s1870
        %v1881 = vmul.f32 %v1880, %v1860
        %v1882 = vstv %s1872
        %v1883 = vmul.f32 %v1882, %v1861
        %v1884 = vadd.f32 %v1881, %v1883
        %v1885 = vmin.f32 %v1860, %v1861
        %v1886 = vstv %s1874
        %v1887 = vmul.f32 %v1886, %v1885
        %v1888 = vadd.f32 %v1884, %v1887
        %v1889 = vmul.f32 %v1888, %v1879
        %v1890 = vadd.f32 %v1858, %v1889
        %s1891 = sadd.s32 %s1731, 5
        %v1892 = vld [vmem:[%s1310] sm:$0x1]
        %v1893 = vld [vmem:[%s1358] sm:$0x1]
        %s1894 = sshra.s32 %s1891, 7
        %s1895 = sand.u32 %s1891, 127
        %s1896 = sadd.s32 %s1894, %s72
        %s1897 = smul.u32 %s1896, 128
        %s1898 = sshra.s32 %s1891, 7
        %s1899 = sand.u32 %s1891, 127
        %s1900 = sadd.s32 %s1897, %s1899
        %s1901 = sld [smem:[#allocation5 + %s1900]]
        %s1902 = scvt.s32.f32 %s1901
        %s1903 = sld [smem:[#allocation6 + %s1900]]
        %s1904 = scvt.s32.f32 %s1903
        %s1905 = sld [smem:[#allocation7 + %s1900]]
        %s1906 = scvt.s32.f32 %s1905
        %s1907 = sld [smem:[#allocation4 + %s1900]]
        %v1908 = vstv %s1907
        %vm1909 = vcmp.eq.s32.totalorder %v1730, %v1908
        %v1910 = vsel %vm1909, 1, 0
        %v1911 = vcvt.s32.f32 %v1910
        %v1912 = vstv %s1902
        %v1913 = vmul.f32 %v1912, %v1892
        %v1914 = vstv %s1904
        %v1915 = vmul.f32 %v1914, %v1893
        %v1916 = vadd.f32 %v1913, %v1915
        %v1917 = vmin.f32 %v1892, %v1893
        %v1918 = vstv %s1906
        %v1919 = vmul.f32 %v1918, %v1917
        %v1920 = vadd.f32 %v1916, %v1919
        %v1921 = vmul.f32 %v1920, %v1911
        %v1922 = vadd.f32 %v1890, %v1921
        %s1923 = sadd.s32 %s1731, 6
        %v1924 = vld [vmem:[%s1318] sm:$0x1]
        %v1925 = vld [vmem:[%s1366] sm:$0x1]
        %s1926 = sshra.s32 %s1923, 7
        %s1927 = sand.u32 %s1923, 127
        %s1928 = sadd.s32 %s1926, %s72
        %s1929 = smul.u32 %s1928, 128
        %s1930 = sshra.s32 %s1923, 7
        %s1931 = sand.u32 %s1923, 127
        %s1932 = sadd.s32 %s1929, %s1931
        %s1933 = sld [smem:[#allocation5 + %s1932]]
        %s1934 = scvt.s32.f32 %s1933
        %s1935 = sld [smem:[#allocation6 + %s1932]]
        %s1936 = scvt.s32.f32 %s1935
        %s1937 = sld [smem:[#allocation7 + %s1932]]
        %s1938 = scvt.s32.f32 %s1937
        %s1939 = sld [smem:[#allocation4 + %s1932]]
        %v1940 = vstv %s1939
        %vm1941 = vcmp.eq.s32.totalorder %v1730, %v1940
        %v1942 = vsel %vm1941, 1, 0
        %v1943 = vcvt.s32.f32 %v1942
        %v1944 = vstv %s1934
        %v1945 = vmul.f32 %v1944, %v1924
        %v1946 = vstv %s1936
        %v1947 = vmul.f32 %v1946, %v1925
        %v1948 = vadd.f32 %v1945, %v1947
        %v1949 = vmin.f32 %v1924, %v1925
        %v1950 = vstv %s1938
        %v1951 = vmul.f32 %v1950, %v1949
        %v1952 = vadd.f32 %v1948, %v1951
        %v1953 = vmul.f32 %v1952, %v1943
        %v1954 = vadd.f32 %v1922, %v1953
        %s1955 = sadd.s32 %s1731, 7
        %v1956 = vld [vmem:[%s1326] sm:$0x1]
        %v1957 = vld [vmem:[%s1374] sm:$0x1]
        %s1958 = sshra.s32 %s1955, 7
        %s1959 = sand.u32 %s1955, 127
        %s1960 = sadd.s32 %s1958, %s72
        %s1961 = smul.u32 %s1960, 128
        %s1962 = sshra.s32 %s1955, 7
        %s1963 = sand.u32 %s1955, 127
        %s1964 = sadd.s32 %s1961, %s1963
        %s1965 = sld [smem:[#allocation5 + %s1964]]
        %s1966 = scvt.s32.f32 %s1965
        %s1967 = sld [smem:[#allocation6 + %s1964]]
        %s1968 = scvt.s32.f32 %s1967
        %s1969 = sld [smem:[#allocation7 + %s1964]]
        %s1970 = scvt.s32.f32 %s1969
        %s1971 = sld [smem:[#allocation4 + %s1964]]
        %v1972 = vstv %s1971
        %vm1973 = vcmp.eq.s32.totalorder %v1730, %v1972
        %v1974 = vsel %vm1973, 1, 0
        %v1975 = vcvt.s32.f32 %v1974
        %v1976 = vstv %s1966
        %v1977 = vmul.f32 %v1976, %v1956
        %v1978 = vstv %s1968
        %v1979 = vmul.f32 %v1978, %v1957
        %v1980 = vadd.f32 %v1977, %v1979
        %v1981 = vmin.f32 %v1956, %v1957
        %v1982 = vstv %s1970
        %v1983 = vmul.f32 %v1982, %v1981
        %v1984 = vadd.f32 %v1980, %v1983
        %v1985 = vmul.f32 %v1984, %v1975
        %v1986 = vadd.f32 %v1954, %v1985
        %v1987 = vld [vmem:[%s1514] sm:$0x1]
        %v1988 = vadd.f32 %v1987, %v1986
        %vm1989 = vcmask 122880
        %1990 = vst.msk [vmem:[%s1514] sm:$0x1] %vm1989, %v1988
        %s1991 = sand.u32 %s820, 1
        %s1992 = scalar_lea.sflag [#allocation10], %s1991
        %s1993 = sand.u32 %s820, 1
        %s1994 = scalar_lea.vmem [#allocation28], %s1993
        // Predicated region
        $region137: #{tpu_custom_call.1} parent=83 // pred_check
          %p1995 = pneg %p830
        $region138: #{tpu_custom_call.1} parent=83 // pred_check_branch
          %1997 = sbr.rel (%p1995) target = $region140
        $region139: #{tpu_custom_call.1} parent=83 // pred_region
          %s1999 = ssub.s32 16, 16
          %2000 = vsyncadd %s1992, %s1999
          %s2001 = smul.addr %s72, 16
          %s2002 = scalar_lea.hbm %s21, %s2001
          %s2004 = sshll.u32 %s1994, 4
          %s2005 = int_to_ptr.vmem [resolvable:$true] %s2004
          %2007 = dma.vmem_to_hbm [thread:$0]  %s2005, 16, %s2002, %s1992
        $region140: #{tpu_custom_call.1} parent=83 // pred_fallthru
          _
      $region84: #{tpu_custom_call.1} parent=5 // pred_fallthru
        _
      %p2008 = scmp.le.s32.totalorder 2, %s63
      // Predicated region
      $region141: #{tpu_custom_call.1} parent=5 // pred_check
        %p2009 = pneg %p2008
      $region142: #{tpu_custom_call.1} parent=5 // pred_check_branch
        %2011 = sbr.rel (%p2009) target = $region144
      $region143: #{tpu_custom_call.1} parent=5 // pred_region
        %s2012 = ssub.s32 %s63, 2
        // Predicated region
        $region145: #{tpu_custom_call.1} parent=143 // pred_check
          %p2013 = pneg %p836
        $region146: #{tpu_custom_call.1} parent=143 // pred_check_branch
          %2015 = sbr.rel (%p2013) target = $region148
        $region147: #{tpu_custom_call.1} parent=143 // pred_region
          %s2016 = sand.u32 %s821, 1
          %s2017 = scalar_lea.sflag [#allocation10], %s2016
          %s2018 = sand.u32 %s821, 1
          %s2019 = scalar_lea.vmem [#allocation28], %s2018
          %2020 = dma.done %s2017, 16
        $region148: #{tpu_custom_call.1} parent=143 // pred_fallthru
          _
      $region144: #{tpu_custom_call.1} parent=5 // pred_fallthru
        _
    $region6: #{tpu_custom_call.1} parent=1 // loop_footer
      %s67 = sadd.s32 1, %s63
    $region7: #{tpu_custom_call.1} parent=1 // loop_footer_branch
      %62 = sbr.rel target = $region3
    $region8: #{tpu_custom_call.1} parent=1 // loop_exit
      _
    %2021 = vsyncpa [#allocation9], 1
    %s2022 = scalar_lea.sflag [#allocation9], 1
    %2023 = vsyncpa %s2022, 1
    %2024 = vsyncpa [#allocation12], 1
    %s2025 = scalar_lea.sflag [#allocation12], 1
    %2026 = vsyncpa %s2025, 1
    %2027 = vsyncpa [#allocation15], 1
    %s2028 = scalar_lea.sflag [#allocation15], 1
    %2029 = vsyncpa %s2028, 1
    %2030 = vsyncpa [#allocation18], 1
    %s2031 = scalar_lea.sflag [#allocation18], 1
    %2032 = vsyncpa %s2031, 1
    %2033 = vsyncpa [#allocation21], 1
    %s2034 = scalar_lea.sflag [#allocation21], 1
    %2035 = vsyncpa %s2034, 1
    %2036 = vsyncpa [#allocation24], 1
    %s2037 = scalar_lea.sflag [#allocation24], 1
    %2038 = vsyncpa %s2037, 1
    %2039 = vsyncpa [#allocation27], 1
    %s2040 = scalar_lea.sflag [#allocation27], 1
    %2041 = vsyncpa %s2040, 1
    %2042 = vsyncpa [#allocation10], 1
    %s2043 = scalar_lea.sflag [#allocation10], 1
    %2044 = vsyncpa %s2043, 1

</llo_original>
